<compile_context>
chip_gen: v5e
topology: v5e:2x2
jax: 0.10.0
libtpu: 0.0.40
codegen_flags: <defaults>
</compile_context>

<pallas_src>
import functools

import jax
import jax.numpy as jnp
from jax.experimental import pallas as pl
from jax.experimental.pallas import tpu as pltpu


def conv_out_dim(length_in, kernel, stride, padding, dilation):
    return (length_in + 2 * padding - dilation * (kernel - 1) - 1) // stride + 1


# ----------------------------- fused Pallas kernel -----------------------------

def _fused_kernel(
    x_ref,                       # (Bt, Cin*L)        f32
    m1_ref, s1_ref,              # conv1 (+bn1 folded) dense matrix / flat shift
    p1_ref,                      # pool1 tap-selection matrices (K, Cmed*L1, Cmed*L2)
    m2_ref, s2_ref,              # conv2 (+bn2 folded)
    p2_ref,                      # pool2 tap-selection matrices
    w3_ref, s3_ref,              # fc1 (+bn3 folded)
    w4_ref, b4_ref,              # fc2
    w5_ref, b5_ref,              # decoder linear 1
    w6_ref, b6_ref,              # decoder linear 2
    t1_ref, tb1_ref,             # decoder conv-transpose 1 as dense matrix / flat bias
    t2_ref, tb2_ref,             # decoder conv-transpose 2 as dense matrix / flat bias
    out_ref,                     # (Bt, Cin*L_dec)    f32
):
    f32, bf16 = jnp.float32, jnp.bfloat16

    def mm(a, w_ref_):
        # bf16 MXU operands, f32 accumulation.
        return jnp.dot(a.astype(bf16), w_ref_[...], preferred_element_type=f32)

    def pool(a, taps_ref):
        # Elementwise max of K gathered taps (one-hot selection matrices precomputed).
        ab = a.astype(bf16)
        out = None
        for j in range(taps_ref.shape[0]):
            v = jnp.dot(ab, taps_ref[j], preferred_element_type=f32)
            out = v if out is None else jnp.maximum(out, v)
        return out

    # ---------------- encoder (Net1D) ----------------
    h = jnp.maximum(mm(x_ref[...], m1_ref) + s1_ref[...], 0.0)     # conv1+bn1+relu
    h = pool(h, p1_ref)                                             # maxpool1
    h = jnp.maximum(mm(h, m2_ref) + s2_ref[...], 0.0)               # conv2+bn2+relu
    h = pool(h, p2_ref)                                             # maxpool2
    h = jnp.maximum(mm(h, w3_ref) + s3_ref[...], 0.0)               # fc1+bn3+relu
    emb = jnp.tanh(mm(h, w4_ref) + b4_ref[...])                     # fc2+tanh

    # ---------------- decoder ----------------
    d = jnp.maximum(mm(emb, w5_ref) + b5_ref[...], 0.0)             # linear+relu
    d = jnp.maximum(mm(d, w6_ref) + b6_ref[...], 0.0)               # linear+relu (flat = Unflatten)
    d = jnp.maximum(mm(d, t1_ref) + tb1_ref[...], 0.0)              # conv-transpose 1 + relu
    out_ref[...] = (mm(d, t2_ref) + tb2_ref[...]).astype(out_ref.dtype)   # conv-transpose 2


# ----------------------------- wrapper -----------------------------

def _pick_batch_tile(b):
    # 256 fills the 2x256x256 MXU on v6e/v7x; on v5e (4x128x128) a 256 tile splits into two
    # clean passes. Tiny batches round up to the 8-row sublane granule.
    for t in (256, 128):
        if b >= t:
            return t
    return max(8, ((b + 7) // 8) * 8)


def mass_spec_autoencoder_forward(x, fused_params, cfg):
    b, c_in, length = x.shape
    k1, k2 = cfg["conv_kernel_dim_1"], cfg["conv_kernel_dim_2"]
    dil = cfg["conv_dilation"]
    lt1 = ((cfg["pool_kernel_dim_2"] - 1) * cfg["conv_stride_2"]
           - 2 * cfg["conv_padding_2"] + dil * (k2 - 1) + 1)
    l_dec = ((lt1 - 1) * cfg["conv_stride_1"]
             - 2 * cfg["conv_padding_1"] + dil * (k1 - 1) + 1)

    d_in = c_in * length
    d_out = c_in * l_dec

    bt = _pick_batch_tile(b)
    b_pad = ((b + bt - 1) // bt) * bt

    # Lane-dense input slab; pad batch up to a whole number of tiles.
    x_flat = x.reshape(b, d_in).astype(jnp.float32)
    if b_pad != b:
        x_flat = jnp.pad(x_flat, ((0, b_pad - b), (0, 0)))

    weight_specs = [
        pl.BlockSpec(a.shape, lambda *i, nd=a.ndim: (0,) * nd) for a in fused_params
    ]

    out_flat = pl.pallas_call(
        _fused_kernel,
        out_shape=jax.ShapeDtypeStruct((b_pad, d_out), jnp.float32),
        grid=(b_pad // bt,),
        in_specs=[pl.BlockSpec((bt, d_in), lambda i: (i, 0))] + weight_specs,
        out_specs=pl.BlockSpec((bt, d_out), lambda i: (i, 0)),
        compiler_params=pltpu.CompilerParams(dimension_semantics=("parallel",)),
    )(x_flat, *fused_params)

    return out_flat[:b].reshape(b, c_in, l_dec)


# ----------------------------- parameter prep (one-time, outside the forward) -----------------------------

def _conv_matrix(w, l_in, stride, padding, dilation, scale=None):
    """Conv1d as a dense (Cin*Lin, Cout*Lout) matrix on the channel-major flat layout."""
    co, ci, k = w.shape
    l_out = conv_out_dim(l_in, k, stride, padding, dilation)
    if scale is not None:
        w = w * scale[:, None, None]
    li = jnp.arange(l_in)[:, None]
    lo = jnp.arange(l_out)[None, :]
    m = jnp.zeros((ci, l_in, co, l_out), jnp.float32)
    for kk in range(k):
        g = (li == lo * stride + kk * dilation - padding).astype(jnp.float32)
        m = m + jnp.einsum("oc,il->ciol", w[:, :, kk].astype(jnp.float32), g)
    return m.reshape(ci * l_in, co * l_out)


def _conv_transpose_matrix(w, l_in, stride, padding, dilation):
    """ConvTranspose1d (torch weight (Cin, Cout, K)) as a dense (Cin*Lin, Cout*Lout) matrix."""
    ci, co, k = w.shape
    l_out = (l_in - 1) * stride - 2 * padding + dilation * (k - 1) + 1
    li = jnp.arange(l_in)[:, None]
    lo = jnp.arange(l_out)[None, :]
    m = jnp.zeros((ci, l_in, co, l_out), jnp.float32)
    for kk in range(k):
        g = (lo == li * stride + kk * dilation - padding).astype(jnp.float32)
        m = m + jnp.einsum("co,il->ciol", w[:, :, kk].astype(jnp.float32), g)
    return m.reshape(ci * l_in, co * l_out)


def _pool_taps(c, l_in, k, stride, padding, dilation):
    """(k, C*Lin, C*Lout) one-hot selection matrices for MaxPool1d on the flat layout."""
    l_out = conv_out_dim(l_in, k, stride, padding, dilation)
    li = jnp.arange(l_in)[:, None]
    lo = jnp.arange(l_out)[None, :]
    eye_c = jnp.eye(c, dtype=jnp.float32)
    taps = []
    for j in range(k):
        g = (li == lo * stride + j * dilation - padding).astype(jnp.float32)
        taps.append(jnp.kron(eye_c, g))
    return jnp.stack(taps)


def prepare_fused_params(params, cfg, eps=1e-5):
    """Fold conv/linear bias + eval-mode BatchNorm into the dense per-layer matrices and
    flat shifts. All matmul operands are bf16; shifts stay f32."""
    dil = cfg["conv_dilation"]
    c_in, c_med, c_out = cfg["channels_in"], cfg["channels_med_1"], cfg["channels_out"]
    k1, k2 = cfg["conv_kernel_dim_1"], cfg["conv_kernel_dim_2"]
    length = cfg["length_in"]

    out_1 = conv_out_dim(length, k1, cfg["conv_stride_1"], cfg["conv_padding_1"], dil)
    out_2 = conv_out_dim(out_1, cfg["pool_kernel_dim_1"], cfg["pool_stride_1"],
                         cfg["pool_padding_1"], cfg["pool_dilation"])
    out_3 = conv_out_dim(out_2, k2, cfg["conv_stride_2"], cfg["conv_padding_2"], dil)
    l_p = cfg["pool_kernel_dim_2"]
    lt1 = (l_p - 1) * cfg["conv_stride_2"] - 2 * cfg["conv_padding_2"] + dil * (k2 - 1) + 1
    l_dec = (lt1 - 1) * cfg["conv_stride_1"] - 2 * cfg["conv_padding_1"] + dil * (k1 - 1) + 1

    def bn_fold(pre, bias):
        s = params[pre + "_g"] / jnp.sqrt(params[pre + "_v"] + eps)
        return s, params[pre + "_b"] - params[pre + "_m"] * s + bias * s

    s1, sh1 = bn_fold("bn1", params["conv1_b"])
    s2, sh2 = bn_fold("bn2", params["conv2_b"])
    s3, sh3 = bn_fold("bn3", params["fc1_b"])

    bf16, f32 = jnp.bfloat16, jnp.float32
    row = lambda v: v.reshape(1, -1).astype(f32)
    chan_row = lambda v, l: jnp.repeat(v, l).reshape(1, -1).astype(f32)

    m1 = _conv_matrix(params["conv1_w"], length, cfg["conv_stride_1"], cfg["conv_padding_1"], dil, s1)
    p1 = _pool_taps(c_med, out_1, cfg["pool_kernel_dim_1"], cfg["pool_stride_1"],
                    cfg["pool_padding_1"], cfg["pool_dilation"])
    m2 = _conv_matrix(params["conv2_w"], out_2, cfg["conv_stride_2"], cfg["conv_padding_2"], dil, s2)
    p2 = _pool_taps(c_out, out_3, cfg["pool_kernel_dim_2"], cfg["pool_stride_2"],
                    cfg["pool_padding_2"], cfg["pool_dilation"])
    t1 = _conv_transpose_matrix(params["dct1_w"], l_p, cfg["conv_stride_2"], cfg["conv_padding_2"], dil)
    t2 = _conv_transpose_matrix(params["dct2_w"], lt1, cfg["conv_stride_1"], cfg["conv_padding_1"], dil)

    return (
        m1.astype(bf16), chan_row(sh1, out_1),
        p1.astype(bf16),
        m2.astype(bf16), chan_row(sh2, out_3),
        p2.astype(bf16),
        (params["fc1_w"] * s3[None, :]).astype(bf16), row(sh3),
        params["fc2_w"].astype(bf16), row(params["fc2_b"]),
        params["dlin1_w"].astype(bf16), row(params["dlin1_b"]),
        params["dlin2_w"].astype(bf16), row(params["dlin2_b"]),
        t1.astype(bf16), chan_row(params["dct1_b"], lt1),
        t2.astype(bf16), chan_row(params["dct2_b"], l_dec),
    )


# ----------------------------- params & plain-JAX reference -----------------------------

def init_params(key, cfg):
    ks = iter(jax.random.split(key, 32))
    nrm = lambda shape, s=0.1: s * jax.random.normal(next(ks), shape, jnp.float32)
    uni = lambda shape, lo, hi: jax.random.uniform(next(ks), shape, jnp.float32, lo, hi)

    c_in, c_med, c_out = cfg["channels_in"], cfg["channels_med_1"], cfg["channels_out"]
    k1, k2 = cfg["conv_kernel_dim_1"], cfg["conv_kernel_dim_2"]
    out_1 = conv_out_dim(cfg["length_in"], k1, cfg["conv_stride_1"],
                         cfg["conv_padding_1"], cfg["conv_dilation"])
    out_2 = conv_out_dim(out_1, cfg["pool_kernel_dim_1"], cfg["pool_stride_1"],
                         cfg["pool_padding_1"], cfg["pool_dilation"])
    out_3 = conv_out_dim(out_2, k2, cfg["conv_stride_2"],
                         cfg["conv_padding_2"], cfg["conv_dilation"])
    out_4 = conv_out_dim(out_3, cfg["pool_kernel_dim_2"], cfg["pool_stride_2"],
                         cfg["pool_padding_2"], cfg["pool_dilation"])
    cnn_out = c_out * out_4
    fc1, emb = cfg["fc_dim_1"], cfg["emb_dim"]

    return {
        "conv1_w": nrm((c_med, c_in, k1)), "conv1_b": nrm((c_med,)),
        "bn1_g": uni((c_med,), 0.5, 1.5), "bn1_b": nrm((c_med,)),
        "bn1_m": nrm((c_med,)), "bn1_v": uni((c_med,), 0.5, 1.5),
        "conv2_w": nrm((c_out, c_med, k2)), "conv2_b": nrm((c_out,)),
        "bn2_g": uni((c_out,), 0.5, 1.5), "bn2_b": nrm((c_out,)),
        "bn2_m": nrm((c_out,)), "bn2_v": uni((c_out,), 0.5, 1.5),
        "fc1_w": nrm((cnn_out, fc1)), "fc1_b": nrm((fc1,)),
        "bn3_g": uni((fc1,), 0.5, 1.5), "bn3_b": nrm((fc1,)),
        "bn3_m": nrm((fc1,)), "bn3_v": uni((fc1,), 0.5, 1.5),
        "fc2_w": nrm((fc1, emb)), "fc2_b": nrm((emb,)),
        "dlin1_w": nrm((emb, fc1)), "dlin1_b": nrm((fc1,)),
        "dlin2_w": nrm((fc1, c_out * cfg["pool_kernel_dim_2"])),
        "dlin2_b": nrm((c_out * cfg["pool_kernel_dim_2"],)),
        "dct1_w": nrm((c_out, c_med, k2)), "dct1_b": nrm((c_med,)),
        "dct2_w": nrm((c_med, c_in, k1)), "dct2_b": nrm((c_in,)),
    }


def _ref_conv1d(x, w, b, stride, padding, dilation):
    y = jax.lax.conv_general_dilated(
        x, w, window_strides=(stride,), padding=[(padding, padding)],
        rhs_dilation=(dilation,), dimension_numbers=("NCH", "OIH", "NCH"))
    return y + b[None, :, None]


def _ref_conv_transpose1d(x, w_t, b, stride, padding, dilation):
    k = w_t.shape[-1]
    w_conv = jnp.flip(w_t, axis=2).transpose(1, 0, 2)
    pad_eq = dilation * (k - 1) - padding
    y = jax.lax.conv_general_dilated(
        x, w_conv, window_strides=(1,), padding=[(pad_eq, pad_eq)],
        lhs_dilation=(stride,), rhs_dilation=(dilation,),
        dimension_numbers=("NCH", "OIH", "NCH"))
    return y + b[None, :, None]


def _ref_maxpool1d(x, k, stride, padding, dilation):
    return jax.lax.reduce_window(
        x, -jnp.inf, jax.lax.max,
        window_dimensions=(1, 1, k), window_strides=(1, 1, stride),
        padding=[(0, 0), (0, 0), (padding, padding)], window_dilation=(1, 1, dilation))


def reference_forward(params, x, cfg, eps=1e-5):
    def bn_c(h, pre):
        s = params[pre + "_g"] / jnp.sqrt(params[pre + "_v"] + eps)
        return h * s[None, :, None] + (params[pre + "_b"] - params[pre + "_m"] * s)[None, :, None]

    dil = cfg["conv_dilation"]
    h = _ref_conv1d(x, params["conv1_w"], params["conv1_b"],
                    cfg["conv_stride_1"], cfg["conv_padding_1"], dil)
    h = _ref_maxpool1d(jax.nn.relu(bn_c(h, "bn1")), cfg["pool_kernel_dim_1"],
                       cfg["pool_stride_1"], cfg["pool_padding_1"], cfg["pool_dilation"])
    h = _ref_conv1d(h, params["conv2_w"], params["conv2_b"],
                    cfg["conv_stride_2"], cfg["conv_padding_2"], dil)
    h = _ref_maxpool1d(jax.nn.relu(bn_c(h, "bn2")), cfg["pool_kernel_dim_2"],
                       cfg["pool_stride_2"], cfg["pool_padding_2"], cfg["pool_dilation"])
    bsz = x.shape[0]
    h = h.reshape(bsz, -1)
    h = h @ params["fc1_w"] + params["fc1_b"]
    s3 = params["bn3_g"] / jnp.sqrt(params["bn3_v"] + eps)
    h = jax.nn.relu(h * s3[None, :] + (params["bn3_b"] - params["bn3_m"] * s3)[None, :])
    emb = jnp.tanh(h @ params["fc2_w"] + params["fc2_b"])

    d = jax.nn.relu(emb @ params["dlin1_w"] + params["dlin1_b"])
    d = jax.nn.relu(d @ params["dlin2_w"] + params["dlin2_b"])
    d = d.reshape(bsz, cfg["channels_out"], cfg["pool_kernel_dim_2"])
    d = jax.nn.relu(_ref_conv_transpose1d(d, params["dct1_w"], params["dct1_b"],
                                          cfg["conv_stride_2"], cfg["conv_padding_2"], dil))
    return _ref_conv_transpose1d(d, params["dct2_w"], params["dct2_b"],
                                 cfg["conv_stride_1"], cfg["conv_padding_1"], dil)


# ----------------------------- main -----------------------------

if __name__ == "__main__":
    cfg = {
        "length_in": 64,
        "channels_in": 2,
        "channels_med_1": 8,
        "channels_out": 4,
        "conv_kernel_dim_1": 3, "conv_stride_1": 1, "conv_padding_1": 1,
        "conv_kernel_dim_2": 3, "conv_stride_2": 1, "conv_padding_2": 1,
        "conv_dilation": 1,
        "pool_kernel_dim_1": 2, "pool_stride_1": 2, "pool_padding_1": 0,
        "pool_kernel_dim_2": 2, "pool_stride_2": 2, "pool_padding_2": 0,
        "pool_dilation": 1,
        "fc_dim_1": 32,
        "emb_dim": 16,
    }

    key = jax.random.PRNGKey(0)
    k_param, k_x = jax.random.split(key)
    params = init_params(k_param, cfg)
    fused_params = prepare_fused_params(params, cfg)   # one-time prep, outside the forward

    B = 2
    x = jax.random.normal(k_x, (B, cfg["channels_in"], cfg["length_in"]), jnp.float32)

    fwd = jax.jit(functools.partial(mass_spec_autoencoder_forward, cfg=cfg))
    out = jax.block_until_ready(fwd(x, fused_params))

    ref = jax.block_until_ready(reference_forward(params, x, cfg))
    assert out.shape == ref.shape, (out.shape, ref.shape)
    assert bool(jnp.all(jnp.isfinite(out)))
    max_err = float(jnp.max(jnp.abs(out - ref)))
    assert bool(jnp.allclose(out, ref, rtol=5e-2, atol=2e-2)), f"max abs err {max_err}"
    print("KERNEL_OK")
</pallas_src>

<mosaic_0001>
module attributes {stable_mosaic.version = 11 : i64} {
  func.func @_fused_kernel(%arg0: i32, %arg1: memref<8x128xf32, #tpu.memory_space<vmem>>, %arg2: memref<128x512xbf16, #tpu.memory_space<vmem>>, %arg3: memref<1x512xf32, #tpu.memory_space<vmem>>, %arg4: memref<2x512x256xbf16, #tpu.memory_space<vmem>>, %arg5: memref<256x128xbf16, #tpu.memory_space<vmem>>, %arg6: memref<1x128xf32, #tpu.memory_space<vmem>>, %arg7: memref<2x128x64xbf16, #tpu.memory_space<vmem>>, %arg8: memref<64x32xbf16, #tpu.memory_space<vmem>>, %arg9: memref<1x32xf32, #tpu.memory_space<vmem>>, %arg10: memref<32x16xbf16, #tpu.memory_space<vmem>>, %arg11: memref<1x16xf32, #tpu.memory_space<vmem>>, %arg12: memref<16x32xbf16, #tpu.memory_space<vmem>>, %arg13: memref<1x32xf32, #tpu.memory_space<vmem>>, %arg14: memref<32x8xbf16, #tpu.memory_space<vmem>>, %arg15: memref<1x8xf32, #tpu.memory_space<vmem>>, %arg16: memref<8x16xbf16, #tpu.memory_space<vmem>>, %arg17: memref<1x16xf32, #tpu.memory_space<vmem>>, %arg18: memref<16x4xbf16, #tpu.memory_space<vmem>>, %arg19: memref<1x4xf32, #tpu.memory_space<vmem>>, %arg20: memref<8x4xf32, #tpu.memory_space<vmem>>) attributes {dimension_semantics = [#tpu.dimension_semantics<parallel>], iteration_bounds = array<i64: 1>, scalar_prefetch = 0 : i64, scratch_operands = 0 : i64, tpu.core_type = #tpu.core_type<tc>, window_params = [{transform_indices = @transform_0, window_bounds = array<i64: 8, 128>}, {pipeline_mode = #tpu.pipeline_mode<synchronous>, transform_indices = @transform_1, window_bounds = array<i64: 128, 512>}, {pipeline_mode = #tpu.pipeline_mode<synchronous>, transform_indices = @transform_2, window_bounds = array<i64: 1, 512>}, {pipeline_mode = #tpu.pipeline_mode<synchronous>, transform_indices = @transform_3, window_bounds = array<i64: 2, 512, 256>}, {pipeline_mode = #tpu.pipeline_mode<synchronous>, transform_indices = @transform_4, window_bounds = array<i64: 256, 128>}, {pipeline_mode = #tpu.pipeline_mode<synchronous>, transform_indices = @transform_5, window_bounds = array<i64: 1, 128>}, {pipeline_mode = #tpu.pipeline_mode<synchronous>, transform_indices = @transform_6, window_bounds = array<i64: 2, 128, 64>}, {pipeline_mode = #tpu.pipeline_mode<synchronous>, transform_indices = @transform_7, window_bounds = array<i64: 64, 32>}, {pipeline_mode = #tpu.pipeline_mode<synchronous>, transform_indices = @transform_8, window_bounds = array<i64: 1, 32>}, {pipeline_mode = #tpu.pipeline_mode<synchronous>, transform_indices = @transform_9, window_bounds = array<i64: 32, 16>}, {pipeline_mode = #tpu.pipeline_mode<synchronous>, transform_indices = @transform_10, window_bounds = array<i64: 1, 16>}, {pipeline_mode = #tpu.pipeline_mode<synchronous>, transform_indices = @transform_11, window_bounds = array<i64: 16, 32>}, {pipeline_mode = #tpu.pipeline_mode<synchronous>, transform_indices = @transform_12, window_bounds = array<i64: 1, 32>}, {pipeline_mode = #tpu.pipeline_mode<synchronous>, transform_indices = @transform_13, window_bounds = array<i64: 32, 8>}, {pipeline_mode = #tpu.pipeline_mode<synchronous>, transform_indices = @transform_14, window_bounds = array<i64: 1, 8>}, {pipeline_mode = #tpu.pipeline_mode<synchronous>, transform_indices = @transform_15, window_bounds = array<i64: 8, 16>}, {pipeline_mode = #tpu.pipeline_mode<synchronous>, transform_indices = @transform_16, window_bounds = array<i64: 1, 16>}, {pipeline_mode = #tpu.pipeline_mode<synchronous>, transform_indices = @transform_17, window_bounds = array<i64: 16, 4>}, {pipeline_mode = #tpu.pipeline_mode<synchronous>, transform_indices = @transform_18, window_bounds = array<i64: 1, 4>}, {transform_indices = @transform_19, window_bounds = array<i64: 8, 4>}]} {
    %c0 = arith.constant 0 : index
    %c0_0 = arith.constant 0 : index
    %0 = vector.load %arg1[%c0, %c0_0] : memref<8x128xf32, #tpu.memory_space<vmem>>, vector<8x128xf32>
    %1 = arith.truncf %0 : vector<8x128xf32> to vector<8x128xbf16>
    %c0_1 = arith.constant 0 : index
    %c0_2 = arith.constant 0 : index
    %2 = vector.load %arg2[%c0_1, %c0_2] : memref<128x512xbf16, #tpu.memory_space<vmem>>, vector<128x512xbf16>
    %cst = arith.constant dense<0.000000e+00> : vector<8x512xf32>
    %3 = tpu.matmul %1, %2, %cst {dimension_numbers = #tpu.dot_dimension_numbers<[1], [0], [0], [1], [0, 0, 1, 1], [], []>} : vector<8x128xbf16>, vector<128x512xbf16>, vector<8x512xf32> -> vector<8x512xf32>
    %c0_3 = arith.constant 0 : index
    %c0_4 = arith.constant 0 : index
    %4 = vector.load %arg3[%c0_3, %c0_4] : memref<1x512xf32, #tpu.memory_space<vmem>>, vector<1x512xf32>
    %5 = vector.broadcast %4 : vector<1x512xf32> to vector<8x512xf32>
    %6 = arith.addf %3, %5 : vector<8x512xf32>
    %cst_5 = arith.constant 0.000000e+00 : f32
    %7 = vector.broadcast %cst_5 : f32 to vector<8x512xf32>
    %8 = arith.maximumf %6, %7 : vector<8x512xf32>
    %9 = arith.truncf %8 : vector<8x512xf32> to vector<8x512xbf16>
    %c0_6 = arith.constant 0 : index
    %c0_7 = arith.constant 0 : index
    %c0_8 = arith.constant 0 : index
    %10 = vector.load %arg4[%c0_6, %c0_7, %c0_8] : memref<2x512x256xbf16, #tpu.memory_space<vmem>>, vector<1x512x256xbf16>
    %11 = vector.shape_cast %10 : vector<1x512x256xbf16> to vector<512x256xbf16>
    %cst_9 = arith.constant dense<0.000000e+00> : vector<8x256xf32>
    %12 = tpu.matmul %9, %11, %cst_9 {dimension_numbers = #tpu.dot_dimension_numbers<[1], [0], [0], [1], [0, 0, 1, 1], [], []>} : vector<8x512xbf16>, vector<512x256xbf16>, vector<8x256xf32> -> vector<8x256xf32>
    %c1 = arith.constant 1 : index
    %c0_10 = arith.constant 0 : index
    %c0_11 = arith.constant 0 : index
    %13 = vector.load %arg4[%c1, %c0_10, %c0_11] : memref<2x512x256xbf16, #tpu.memory_space<vmem>>, vector<1x512x256xbf16>
    %14 = vector.shape_cast %13 : vector<1x512x256xbf16> to vector<512x256xbf16>
    %cst_12 = arith.constant dense<0.000000e+00> : vector<8x256xf32>
    %15 = tpu.matmul %9, %14, %cst_12 {dimension_numbers = #tpu.dot_dimension_numbers<[1], [0], [0], [1], [0, 0, 1, 1], [], []>} : vector<8x512xbf16>, vector<512x256xbf16>, vector<8x256xf32> -> vector<8x256xf32>
    %16 = arith.maximumf %12, %15 : vector<8x256xf32>
    %17 = arith.truncf %16 : vector<8x256xf32> to vector<8x256xbf16>
    %c0_13 = arith.constant 0 : index
    %c0_14 = arith.constant 0 : index
    %18 = vector.load %arg5[%c0_13, %c0_14] : memref<256x128xbf16, #tpu.memory_space<vmem>>, vector<256x128xbf16>
    %cst_15 = arith.constant dense<0.000000e+00> : vector<8x128xf32>
    %19 = tpu.matmul %17, %18, %cst_15 {dimension_numbers = #tpu.dot_dimension_numbers<[1], [0], [0], [1], [0, 0, 1, 1], [], []>} : vector<8x256xbf16>, vector<256x128xbf16>, vector<8x128xf32> -> vector<8x128xf32>
    %c0_16 = arith.constant 0 : index
    %c0_17 = arith.constant 0 : index
    %20 = vector.load %arg6[%c0_16, %c0_17] : memref<1x128xf32, #tpu.memory_space<vmem>>, vector<1x128xf32>
    %21 = vector.broadcast %20 : vector<1x128xf32> to vector<8x128xf32>
    %22 = arith.addf %19, %21 : vector<8x128xf32>
    %cst_18 = arith.constant 0.000000e+00 : f32
    %23 = vector.broadcast %cst_18 : f32 to vector<8x128xf32>
    %24 = arith.maximumf %22, %23 : vector<8x128xf32>
    %25 = arith.truncf %24 : vector<8x128xf32> to vector<8x128xbf16>
    %c0_19 = arith.constant 0 : index
    %c0_20 = arith.constant 0 : index
    %c0_21 = arith.constant 0 : index
    %26 = vector.load %arg7[%c0_19, %c0_20, %c0_21] : memref<2x128x64xbf16, #tpu.memory_space<vmem>>, vector<1x128x64xbf16>
    %27 = vector.shape_cast %26 : vector<1x128x64xbf16> to vector<128x64xbf16>
    %cst_22 = arith.constant dense<0.000000e+00> : vector<8x64xf32>
    %28 = tpu.matmul %25, %27, %cst_22 {dimension_numbers = #tpu.dot_dimension_numbers<[1], [0], [0], [1], [0, 0, 1, 1], [], []>} : vector<8x128xbf16>, vector<128x64xbf16>, vector<8x64xf32> -> vector<8x64xf32>
    %c1_23 = arith.constant 1 : index
    %c0_24 = arith.constant 0 : index
    %c0_25 = arith.constant 0 : index
    %29 = vector.load %arg7[%c1_23, %c0_24, %c0_25] : memref<2x128x64xbf16, #tpu.memory_space<vmem>>, vector<1x128x64xbf16>
    %30 = vector.shape_cast %29 : vector<1x128x64xbf16> to vector<128x64xbf16>
    %cst_26 = arith.constant dense<0.000000e+00> : vector<8x64xf32>
    %31 = tpu.matmul %25, %30, %cst_26 {dimension_numbers = #tpu.dot_dimension_numbers<[1], [0], [0], [1], [0, 0, 1, 1], [], []>} : vector<8x128xbf16>, vector<128x64xbf16>, vector<8x64xf32> -> vector<8x64xf32>
    %32 = arith.maximumf %28, %31 : vector<8x64xf32>
    %33 = arith.truncf %32 : vector<8x64xf32> to vector<8x64xbf16>
    %c0_27 = arith.constant 0 : index
    %c0_28 = arith.constant 0 : index
    %34 = vector.load %arg8[%c0_27, %c0_28] : memref<64x32xbf16, #tpu.memory_space<vmem>>, vector<64x32xbf16>
    %cst_29 = arith.constant dense<0.000000e+00> : vector<8x32xf32>
    %35 = tpu.matmul %33, %34, %cst_29 {dimension_numbers = #tpu.dot_dimension_numbers<[1], [0], [0], [1], [0, 0, 1, 1], [], []>} : vector<8x64xbf16>, vector<64x32xbf16>, vector<8x32xf32> -> vector<8x32xf32>
    %c0_30 = arith.constant 0 : index
    %c0_31 = arith.constant 0 : index
    %36 = vector.load %arg9[%c0_30, %c0_31] : memref<1x32xf32, #tpu.memory_space<vmem>>, vector<1x32xf32>
    %37 = vector.broadcast %36 : vector<1x32xf32> to vector<8x32xf32>
    %38 = arith.addf %35, %37 : vector<8x32xf32>
    %cst_32 = arith.constant 0.000000e+00 : f32
    %39 = vector.broadcast %cst_32 : f32 to vector<8x32xf32>
    %40 = arith.maximumf %38, %39 : vector<8x32xf32>
    %41 = arith.truncf %40 : vector<8x32xf32> to vector<8x32xbf16>
    %c0_33 = arith.constant 0 : index
    %c0_34 = arith.constant 0 : index
    %42 = vector.load %arg10[%c0_33, %c0_34] : memref<32x16xbf16, #tpu.memory_space<vmem>>, vector<32x16xbf16>
    %cst_35 = arith.constant dense<0.000000e+00> : vector<8x16xf32>
    %43 = tpu.matmul %41, %42, %cst_35 {dimension_numbers = #tpu.dot_dimension_numbers<[1], [0], [0], [1], [0, 0, 1, 1], [], []>} : vector<8x32xbf16>, vector<32x16xbf16>, vector<8x16xf32> -> vector<8x16xf32>
    %c0_36 = arith.constant 0 : index
    %c0_37 = arith.constant 0 : index
    %44 = vector.load %arg11[%c0_36, %c0_37] : memref<1x16xf32, #tpu.memory_space<vmem>>, vector<1x16xf32>
    %45 = vector.broadcast %44 : vector<1x16xf32> to vector<8x16xf32>
    %46 = arith.addf %43, %45 : vector<8x16xf32>
    %47 = math.tanh %46 : vector<8x16xf32>
    %48 = arith.truncf %47 : vector<8x16xf32> to vector<8x16xbf16>
    %c0_38 = arith.constant 0 : index
    %c0_39 = arith.constant 0 : index
    %49 = vector.load %arg12[%c0_38, %c0_39] : memref<16x32xbf16, #tpu.memory_space<vmem>>, vector<16x32xbf16>
    %cst_40 = arith.constant dense<0.000000e+00> : vector<8x32xf32>
    %50 = tpu.matmul %48, %49, %cst_40 {dimension_numbers = #tpu.dot_dimension_numbers<[1], [0], [0], [1], [0, 0, 1, 1], [], []>} : vector<8x16xbf16>, vector<16x32xbf16>, vector<8x32xf32> -> vector<8x32xf32>
    %c0_41 = arith.constant 0 : index
    %c0_42 = arith.constant 0 : index
    %51 = vector.load %arg13[%c0_41, %c0_42] : memref<1x32xf32, #tpu.memory_space<vmem>>, vector<1x32xf32>
    %52 = vector.broadcast %51 : vector<1x32xf32> to vector<8x32xf32>
    %53 = arith.addf %50, %52 : vector<8x32xf32>
    %cst_43 = arith.constant 0.000000e+00 : f32
    %54 = vector.broadcast %cst_43 : f32 to vector<8x32xf32>
    %55 = arith.maximumf %53, %54 : vector<8x32xf32>
    %56 = arith.truncf %55 : vector<8x32xf32> to vector<8x32xbf16>
    %c0_44 = arith.constant 0 : index
    %c0_45 = arith.constant 0 : index
    %57 = vector.load %arg14[%c0_44, %c0_45] : memref<32x8xbf16, #tpu.memory_space<vmem>>, vector<32x8xbf16>
    %cst_46 = arith.constant dense<0.000000e+00> : vector<8x8xf32>
    %58 = tpu.matmul %56, %57, %cst_46 {dimension_numbers = #tpu.dot_dimension_numbers<[1], [0], [0], [1], [0, 0, 1, 1], [], []>} : vector<8x32xbf16>, vector<32x8xbf16>, vector<8x8xf32> -> vector<8x8xf32>
    %c0_47 = arith.constant 0 : index
    %c0_48 = arith.constant 0 : index
    %59 = vector.load %arg15[%c0_47, %c0_48] : memref<1x8xf32, #tpu.memory_space<vmem>>, vector<1x8xf32>
    %60 = vector.broadcast %59 : vector<1x8xf32> to vector<8x8xf32>
    %61 = arith.addf %58, %60 : vector<8x8xf32>
    %cst_49 = arith.constant 0.000000e+00 : f32
    %62 = vector.broadcast %cst_49 : f32 to vector<8x8xf32>
    %63 = arith.maximumf %61, %62 : vector<8x8xf32>
    %64 = arith.truncf %63 : vector<8x8xf32> to vector<8x8xbf16>
    %c0_50 = arith.constant 0 : index
    %c0_51 = arith.constant 0 : index
    %65 = vector.load %arg16[%c0_50, %c0_51] : memref<8x16xbf16, #tpu.memory_space<vmem>>, vector<8x16xbf16>
    %cst_52 = arith.constant dense<0.000000e+00> : vector<8x16xf32>
    %66 = tpu.matmul %64, %65, %cst_52 {dimension_numbers = #tpu.dot_dimension_numbers<[1], [0], [0], [1], [0, 0, 1, 1], [], []>} : vector<8x8xbf16>, vector<8x16xbf16>, vector<8x16xf32> -> vector<8x16xf32>
    %c0_53 = arith.constant 0 : index
    %c0_54 = arith.constant 0 : index
    %67 = vector.load %arg17[%c0_53, %c0_54] : memref<1x16xf32, #tpu.memory_space<vmem>>, vector<1x16xf32>
    %68 = vector.broadcast %67 : vector<1x16xf32> to vector<8x16xf32>
    %69 = arith.addf %66, %68 : vector<8x16xf32>
    %cst_55 = arith.constant 0.000000e+00 : f32
    %70 = vector.broadcast %cst_55 : f32 to vector<8x16xf32>
    %71 = arith.maximumf %69, %70 : vector<8x16xf32>
    %72 = arith.truncf %71 : vector<8x16xf32> to vector<8x16xbf16>
    %c0_56 = arith.constant 0 : index
    %c0_57 = arith.constant 0 : index
    %73 = vector.load %arg18[%c0_56, %c0_57] : memref<16x4xbf16, #tpu.memory_space<vmem>>, vector<16x4xbf16>
    %cst_58 = arith.constant dense<0.000000e+00> : vector<8x4xf32>
    %74 = tpu.matmul %72, %73, %cst_58 {dimension_numbers = #tpu.dot_dimension_numbers<[1], [0], [0], [1], [0, 0, 1, 1], [], []>} : vector<8x16xbf16>, vector<16x4xbf16>, vector<8x4xf32> -> vector<8x4xf32>
    %c0_59 = arith.constant 0 : index
    %c0_60 = arith.constant 0 : index
    %75 = vector.load %arg19[%c0_59, %c0_60] : memref<1x4xf32, #tpu.memory_space<vmem>>, vector<1x4xf32>
    %76 = vector.broadcast %75 : vector<1x4xf32> to vector<8x4xf32>
    %77 = arith.addf %74, %76 : vector<8x4xf32>
    %c0_61 = arith.constant 0 : index
    %c0_62 = arith.constant 0 : index
    %78 = vector.load %arg20[%c0_61, %c0_62] : memref<8x4xf32, #tpu.memory_space<vmem>>, vector<8x4xf32>
    tpu.vector_store %arg20[%c0_61, %c0_62], %77 {strides = array<i32>} : memref<8x4xf32, #tpu.memory_space<vmem>>, vector<8x4xf32>,
    return
  }
  func.func @transform_0(%arg0: i32) -> (i32, i32) {
    %c0_i32 = arith.constant 0 : i32
    %c0_i32_0 = arith.constant 0 : i32
    return %arg0, %c0_i32 : i32, i32
  }
  func.func @transform_1(%arg0: i32) -> (i32, i32) {
    %c0_i32 = arith.constant 0 : i32
    %c0_i32_0 = arith.constant 0 : i32
    %c0_i32_1 = arith.constant 0 : i32
    return %c0_i32, %c0_i32_0 : i32, i32
  }
  func.func @transform_2(%arg0: i32) -> (i32, i32) {
    %c0_i32 = arith.constant 0 : i32
    %c0_i32_0 = arith.constant 0 : i32
    %c0_i32_1 = arith.constant 0 : i32
    return %c0_i32, %c0_i32_0 : i32, i32
  }
  func.func @transform_3(%arg0: i32) -> (i32, i32, i32) {
    %c0_i32 = arith.constant 0 : i32
    %c0_i32_0 = arith.constant 0 : i32
    %c0_i32_1 = arith.constant 0 : i32
    %c0_i32_2 = arith.constant 0 : i32
    return %c0_i32, %c0_i32_0, %c0_i32_1 : i32, i32, i32
  }
  func.func @transform_4(%arg0: i32) -> (i32, i32) {
    %c0_i32 = arith.constant 0 : i32
    %c0_i32_0 = arith.constant 0 : i32
    %c0_i32_1 = arith.constant 0 : i32
    return %c0_i32, %c0_i32_0 : i32, i32
  }
  func.func @transform_5(%arg0: i32) -> (i32, i32) {
    %c0_i32 = arith.constant 0 : i32
    %c0_i32_0 = arith.constant 0 : i32
    %c0_i32_1 = arith.constant 0 : i32
    return %c0_i32, %c0_i32_0 : i32, i32
  }
  func.func @transform_6(%arg0: i32) -> (i32, i32, i32) {
    %c0_i32 = arith.constant 0 : i32
    %c0_i32_0 = arith.constant 0 : i32
    %c0_i32_1 = arith.constant 0 : i32
    %c0_i32_2 = arith.constant 0 : i32
    return %c0_i32, %c0_i32_0, %c0_i32_1 : i32, i32, i32
  }
  func.func @transform_7(%arg0: i32) -> (i32, i32) {
    %c0_i32 = arith.constant 0 : i32
    %c0_i32_0 = arith.constant 0 : i32
    %c0_i32_1 = arith.constant 0 : i32
    return %c0_i32, %c0_i32_0 : i32, i32
  }
  func.func @transform_8(%arg0: i32) -> (i32, i32) {
    %c0_i32 = arith.constant 0 : i32
    %c0_i32_0 = arith.constant 0 : i32
    %c0_i32_1 = arith.constant 0 : i32
    return %c0_i32, %c0_i32_0 : i32, i32
  }
  func.func @transform_9(%arg0: i32) -> (i32, i32) {
    %c0_i32 = arith.constant 0 : i32
    %c0_i32_0 = arith.constant 0 : i32
    %c0_i32_1 = arith.constant 0 : i32
    return %c0_i32, %c0_i32_0 : i32, i32
  }
  func.func @transform_10(%arg0: i32) -> (i32, i32) {
    %c0_i32 = arith.constant 0 : i32
    %c0_i32_0 = arith.constant 0 : i32
    %c0_i32_1 = arith.constant 0 : i32
    return %c0_i32, %c0_i32_0 : i32, i32
  }
  func.func @transform_11(%arg0: i32) -> (i32, i32) {
    %c0_i32 = arith.constant 0 : i32
    %c0_i32_0 = arith.constant 0 : i32
    %c0_i32_1 = arith.constant 0 : i32
    return %c0_i32, %c0_i32_0 : i32, i32
  }
  func.func @transform_12(%arg0: i32) -> (i32, i32) {
    %c0_i32 = arith.constant 0 : i32
    %c0_i32_0 = arith.constant 0 : i32
    %c0_i32_1 = arith.constant 0 : i32
    return %c0_i32, %c0_i32_0 : i32, i32
  }
  func.func @transform_13(%arg0: i32) -> (i32, i32) {
    %c0_i32 = arith.constant 0 : i32
    %c0_i32_0 = arith.constant 0 : i32
    %c0_i32_1 = arith.constant 0 : i32
    return %c0_i32, %c0_i32_0 : i32, i32
  }
  func.func @transform_14(%arg0: i32) -> (i32, i32) {
    %c0_i32 = arith.constant 0 : i32
    %c0_i32_0 = arith.constant 0 : i32
    %c0_i32_1 = arith.constant 0 : i32
    return %c0_i32, %c0_i32_0 : i32, i32
  }
  func.func @transform_15(%arg0: i32) -> (i32, i32) {
    %c0_i32 = arith.constant 0 : i32
    %c0_i32_0 = arith.constant 0 : i32
    %c0_i32_1 = arith.constant 0 : i32
    return %c0_i32, %c0_i32_0 : i32, i32
  }
  func.func @transform_16(%arg0: i32) -> (i32, i32) {
    %c0_i32 = arith.constant 0 : i32
    %c0_i32_0 = arith.constant 0 : i32
    %c0_i32_1 = arith.constant 0 : i32
    return %c0_i32, %c0_i32_0 : i32, i32
  }
  func.func @transform_17(%arg0: i32) -> (i32, i32) {
    %c0_i32 = arith.constant 0 : i32
    %c0_i32_0 = arith.constant 0 : i32
    %c0_i32_1 = arith.constant 0 : i32
    return %c0_i32, %c0_i32_0 : i32, i32
  }
  func.func @transform_18(%arg0: i32) -> (i32, i32) {
    %c0_i32 = arith.constant 0 : i32
    %c0_i32_0 = arith.constant 0 : i32
    %c0_i32_1 = arith.constant 0 : i32
    return %c0_i32, %c0_i32_0 : i32, i32
  }
  func.func @transform_19(%arg0: i32) -> (i32, i32) {
    %c0_i32 = arith.constant 0 : i32
    %c0_i32_0 = arith.constant 0 : i32
    return %arg0, %c0_i32 : i32, i32
  }
}

</mosaic_0001>

<llo_original>
// kernel: mass_spec_autoencoder_forward.1
$region0: #{mass_spec_autoencoder_forward.1}
  #allocation0 [shape = 'u32[]', space=smem, size = 0x4, offset = 0x4, fixed_abs, tag = 'smem constant byte address 0x4 - core index']
  #allocation1 [shape = 'u32[72,128]{1,0:T(1,128)}', space=vmem, size = 0x9000, scoped, tag = 'internal scratch']
  %s0 = inlined_call_operand.vmem [shape: f32[8,128], index: 0, kind: input, shape index: {}]
  %s1 = inlined_call_operand.hbm [shape: bf16[128,512], index: 1, kind: input, shape index: {}]
  %s2 = inlined_call_operand.vmem [shape: f32[1,512], index: 2, kind: input, shape index: {}]
  %s3 = inlined_call_operand.hbm [shape: bf16[2,512,256], index: 3, kind: input, shape index: {}]
  %s4 = inlined_call_operand.vmem [shape: bf16[256,128], index: 4, kind: input, shape index: {}]
  %s5 = inlined_call_operand.vmem [shape: f32[1,128], index: 5, kind: input, shape index: {}]
  %s6 = inlined_call_operand.vmem [shape: bf16[2,128,64], index: 6, kind: input, shape index: {}]
  %s7 = inlined_call_operand.vmem [shape: bf16[64,32], index: 7, kind: input, shape index: {}]
  %s8 = inlined_call_operand.vmem [shape: f32[1,32], index: 8, kind: input, shape index: {}]
  %s9 = inlined_call_operand.vmem [shape: bf16[32,16], index: 9, kind: input, shape index: {}]
  %s10 = inlined_call_operand.vmem [shape: f32[1,16], index: 10, kind: input, shape index: {}]
  %s11 = inlined_call_operand.vmem [shape: bf16[16,32], index: 11, kind: input, shape index: {}]
  %s12 = inlined_call_operand.vmem [shape: f32[1,32], index: 12, kind: input, shape index: {}]
  %s13 = inlined_call_operand.vmem [shape: bf16[32,8], index: 13, kind: input, shape index: {}]
  %s14 = inlined_call_operand.vmem [shape: f32[1,8], index: 14, kind: input, shape index: {}]
  %s15 = inlined_call_operand.vmem [shape: bf16[8,16], index: 15, kind: input, shape index: {}]
  %s16 = inlined_call_operand.vmem [shape: f32[1,16], index: 16, kind: input, shape index: {}]
  %s17 = inlined_call_operand.vmem [shape: bf16[16,4], index: 17, kind: input, shape index: {}]
  %s18 = inlined_call_operand.vmem [shape: f32[1,4], index: 18, kind: input, shape index: {}]
  %s19 = inlined_call_operand.vmem [shape: f32[8,4], index: 19, kind: output, shape index: {}]
  %s20 = sld [smem:[#allocation0]]
  $region94: #{mass_spec_autoencoder_forward.1} parent=0
    _
  %s22 = ssub.s32 1, %s20
  %s23 = scalar_select 0, %s22, %s20
  $region1: #{mass_spec_autoencoder_forward.1} parent=0
    #allocation2 [shape = 'u8[131072]{0}', space=vmem, size = 0x20000, scoped, tag = 'input window, operand 1, single buffered']
    #allocation3 [shape = 's32[1]{0}', space=sflag, size = 0x4, scoped, tag = 'scoped memory for mass_spec_autoencoder_forward.1']
    #allocation4 [shape = 'u8[524288]{0}', space=vmem, size = 0x80000, scoped, tag = 'input window, operand 3, single buffered']
    #allocation5 [shape = 's32[1]{0}', space=sflag, size = 0x4, scoped, tag = 'scoped memory for mass_spec_autoencoder_forward.1']
    %24 = vsyncpa [#allocation3], 0
    %25 = vsyncpa [#allocation5], 0
    // Predicated region
    $region2: #{mass_spec_autoencoder_forward.1} parent=1 // pred_check
      _
    $region3: #{mass_spec_autoencoder_forward.1} parent=1 // pred_check_branch
      %27 = sbr.rel (0) target = $region5
    $region4: #{mass_spec_autoencoder_forward.1} parent=1 // pred_region
      _
    $region5: #{mass_spec_autoencoder_forward.1} parent=1 // pred_fallthru
      _
    // Predicated region
    $region6: #{mass_spec_autoencoder_forward.1} parent=1 // pred_check
      _
    $region7: #{mass_spec_autoencoder_forward.1} parent=1 // pred_check_branch
      %29 = sbr.rel (0) target = $region9
    $region8: #{mass_spec_autoencoder_forward.1} parent=1 // pred_region
      %31 = vsyncadd [#allocation3], 0
      %s32 = sshll.u32 %s1, 4
      %s33 = int_to_ptr.hbm [resolvable:$true] %s32
      %s34 = sshll.u32 [#allocation2], 4
      %s35 = int_to_ptr.vmem [resolvable:$true] %s34
      %40 = dma.hbm_to_vmem [thread:$0]  %s33, 4096, %s35, [#allocation3], 256, 256, 16
    $region9: #{mass_spec_autoencoder_forward.1} parent=1 // pred_fallthru
      _
    // Predicated region
    $region10: #{mass_spec_autoencoder_forward.1} parent=1 // pred_check
      _
    $region11: #{mass_spec_autoencoder_forward.1} parent=1 // pred_check_branch
      %42 = sbr.rel (0) target = $region13
    $region12: #{mass_spec_autoencoder_forward.1} parent=1 // pred_region
      _
    $region13: #{mass_spec_autoencoder_forward.1} parent=1 // pred_fallthru
      _
    // Predicated region
    $region14: #{mass_spec_autoencoder_forward.1} parent=1 // pred_check
      _
    $region15: #{mass_spec_autoencoder_forward.1} parent=1 // pred_check_branch
      %44 = sbr.rel (0) target = $region17
    $region16: #{mass_spec_autoencoder_forward.1} parent=1 // pred_region
      %46 = vsyncadd [#allocation5], 0
      %s47 = sshll.u32 %s3, 4
      %s48 = int_to_ptr.hbm [resolvable:$true] %s47
      %s49 = sshll.u32 [#allocation4], 4
      %s50 = int_to_ptr.vmem [resolvable:$true] %s49
      %55 = dma.hbm_to_vmem [thread:$0]  %s48, 16384, %s50, [#allocation5], 128, 128, 8
    $region17: #{mass_spec_autoencoder_forward.1} parent=1 // pred_fallthru
      _
    // Predicated region
    $region18: #{mass_spec_autoencoder_forward.1} parent=1 // pred_check
      _
    $region19: #{mass_spec_autoencoder_forward.1} parent=1 // pred_check_branch
      %57 = sbr.rel (0) target = $region21
    $region20: #{mass_spec_autoencoder_forward.1} parent=1 // pred_region
      _
    $region21: #{mass_spec_autoencoder_forward.1} parent=1 // pred_fallthru
      _
    // Predicated region
    $region22: #{mass_spec_autoencoder_forward.1} parent=1 // pred_check
      _
    $region23: #{mass_spec_autoencoder_forward.1} parent=1 // pred_check_branch
      %59 = sbr.rel (0) target = $region25
    $region24: #{mass_spec_autoencoder_forward.1} parent=1 // pred_region
      _
    $region25: #{mass_spec_autoencoder_forward.1} parent=1 // pred_fallthru
      _
    // Predicated region
    $region26: #{mass_spec_autoencoder_forward.1} parent=1 // pred_check
      _
    $region27: #{mass_spec_autoencoder_forward.1} parent=1 // pred_check_branch
      %61 = sbr.rel (0) target = $region29
    $region28: #{mass_spec_autoencoder_forward.1} parent=1 // pred_region
      _
    $region29: #{mass_spec_autoencoder_forward.1} parent=1 // pred_fallthru
      _
    // Predicated region
    $region30: #{mass_spec_autoencoder_forward.1} parent=1 // pred_check
      _
    $region31: #{mass_spec_autoencoder_forward.1} parent=1 // pred_check_branch
      %63 = sbr.rel (0) target = $region33
    $region32: #{mass_spec_autoencoder_forward.1} parent=1 // pred_region
      _
    $region33: #{mass_spec_autoencoder_forward.1} parent=1 // pred_fallthru
      _
    // Predicated region
    $region34: #{mass_spec_autoencoder_forward.1} parent=1 // pred_check
      _
    $region35: #{mass_spec_autoencoder_forward.1} parent=1 // pred_check_branch
      %65 = sbr.rel (0) target = $region37
    $region36: #{mass_spec_autoencoder_forward.1} parent=1 // pred_region
      _
    $region37: #{mass_spec_autoencoder_forward.1} parent=1 // pred_fallthru
      _
    // Predicated region
    $region38: #{mass_spec_autoencoder_forward.1} parent=1 // pred_check
      _
    $region39: #{mass_spec_autoencoder_forward.1} parent=1 // pred_check_branch
      %67 = sbr.rel (0) target = $region41
    $region40: #{mass_spec_autoencoder_forward.1} parent=1 // pred_region
      _
    $region41: #{mass_spec_autoencoder_forward.1} parent=1 // pred_fallthru
      _
    // Predicated region
    $region42: #{mass_spec_autoencoder_forward.1} parent=1 // pred_check
      _
    $region43: #{mass_spec_autoencoder_forward.1} parent=1 // pred_check_branch
      %69 = sbr.rel (0) target = $region45
    $region44: #{mass_spec_autoencoder_forward.1} parent=1 // pred_region
      _
    $region45: #{mass_spec_autoencoder_forward.1} parent=1 // pred_fallthru
      _
    // Predicated region
    $region46: #{mass_spec_autoencoder_forward.1} parent=1 // pred_check
      _
    $region47: #{mass_spec_autoencoder_forward.1} parent=1 // pred_check_branch
      %71 = sbr.rel (0) target = $region49
    $region48: #{mass_spec_autoencoder_forward.1} parent=1 // pred_region
      _
    $region49: #{mass_spec_autoencoder_forward.1} parent=1 // pred_fallthru
      _
    // Predicated region
    $region50: #{mass_spec_autoencoder_forward.1} parent=1 // pred_check
      _
    $region51: #{mass_spec_autoencoder_forward.1} parent=1 // pred_check_branch
      %73 = sbr.rel (0) target = $region53
    $region52: #{mass_spec_autoencoder_forward.1} parent=1 // pred_region
      _
    $region53: #{mass_spec_autoencoder_forward.1} parent=1 // pred_fallthru
      _
    // Predicated region
    $region54: #{mass_spec_autoencoder_forward.1} parent=1 // pred_check
      _
    $region55: #{mass_spec_autoencoder_forward.1} parent=1 // pred_check_branch
      %75 = sbr.rel (0) target = $region57
    $region56: #{mass_spec_autoencoder_forward.1} parent=1 // pred_region
      _
    $region57: #{mass_spec_autoencoder_forward.1} parent=1 // pred_fallthru
      _
    // Predicated region
    $region58: #{mass_spec_autoencoder_forward.1} parent=1 // pred_check
      _
    $region59: #{mass_spec_autoencoder_forward.1} parent=1 // pred_check_branch
      %77 = sbr.rel (0) target = $region61
    $region60: #{mass_spec_autoencoder_forward.1} parent=1 // pred_region
      _
    $region61: #{mass_spec_autoencoder_forward.1} parent=1 // pred_fallthru
      _
    // Predicated region
    $region62: #{mass_spec_autoencoder_forward.1} parent=1 // pred_check
      _
    $region63: #{mass_spec_autoencoder_forward.1} parent=1 // pred_check_branch
      %79 = sbr.rel (0) target = $region65
    $region64: #{mass_spec_autoencoder_forward.1} parent=1 // pred_region
      _
    $region65: #{mass_spec_autoencoder_forward.1} parent=1 // pred_fallthru
      _
    // Predicated region
    $region66: #{mass_spec_autoencoder_forward.1} parent=1 // pred_check
      _
    $region67: #{mass_spec_autoencoder_forward.1} parent=1 // pred_check_branch
      %81 = sbr.rel (0) target = $region69
    $region68: #{mass_spec_autoencoder_forward.1} parent=1 // pred_region
      _
    $region69: #{mass_spec_autoencoder_forward.1} parent=1 // pred_fallthru
      _
    // Predicated region
    $region70: #{mass_spec_autoencoder_forward.1} parent=1 // pred_check
      _
    $region71: #{mass_spec_autoencoder_forward.1} parent=1 // pred_check_branch
      %83 = sbr.rel (0) target = $region73
    $region72: #{mass_spec_autoencoder_forward.1} parent=1 // pred_region
      _
    $region73: #{mass_spec_autoencoder_forward.1} parent=1 // pred_fallthru
      _
    // Predicated region
    $region74: #{mass_spec_autoencoder_forward.1} parent=1 // pred_check
      _
    $region75: #{mass_spec_autoencoder_forward.1} parent=1 // pred_check_branch
      %85 = sbr.rel (0) target = $region77
    $region76: #{mass_spec_autoencoder_forward.1} parent=1 // pred_region
      _
    $region77: #{mass_spec_autoencoder_forward.1} parent=1 // pred_fallthru
      _
    // Predicated region
    $region78: #{mass_spec_autoencoder_forward.1} parent=1 // pred_check
      _
    $region79: #{mass_spec_autoencoder_forward.1} parent=1 // pred_check_branch
      %87 = sbr.rel (0) target = $region81
    $region80: #{mass_spec_autoencoder_forward.1} parent=1 // pred_region
      %89 = dma.done [#allocation3], 4096
    $region81: #{mass_spec_autoencoder_forward.1} parent=1 // pred_fallthru
      _
    // Predicated region
    $region82: #{mass_spec_autoencoder_forward.1} parent=1 // pred_check
      _
    $region83: #{mass_spec_autoencoder_forward.1} parent=1 // pred_check_branch
      %91 = sbr.rel (0) target = $region85
    $region84: #{mass_spec_autoencoder_forward.1} parent=1 // pred_region
      %93 = dma.done [#allocation5], 16384
    $region85: #{mass_spec_autoencoder_forward.1} parent=1 // pred_fallthru
      _
    %v95 = vld [vmem:[%s0] sm:$0xff]
    %v96 = vpack.c.bf16 %v95, %v95
    %v97 = vld [vmem:[#allocation2] sm:$0xff]
    %v98 = vld [vmem:[#allocation2 + $0x8] sm:$0xff]
    %v99 = vld [vmem:[#allocation2 + $0x10] sm:$0xff]
    %v100 = vld [vmem:[#allocation2 + $0x18] sm:$0xff]
    %v101 = vld [vmem:[#allocation2 + $0x20] sm:$0xff]
    %v102 = vld [vmem:[#allocation2 + $0x28] sm:$0xff]
    %v103 = vld [vmem:[#allocation2 + $0x30] sm:$0xff]
    %v104 = vld [vmem:[#allocation2 + $0x38] sm:$0xff]
    %v105 = vld [vmem:[#allocation2 + $0x40] sm:$0xff]
    %v106 = vld [vmem:[#allocation2 + $0x48] sm:$0xff]
    %v107 = vld [vmem:[#allocation2 + $0x50] sm:$0xff]
    %v108 = vld [vmem:[#allocation2 + $0x58] sm:$0xff]
    %v109 = vld [vmem:[#allocation2 + $0x60] sm:$0xff]
    %v110 = vld [vmem:[#allocation2 + $0x68] sm:$0xff]
    %v111 = vld [vmem:[#allocation2 + $0x70] sm:$0xff]
    %v112 = vld [vmem:[#allocation2 + $0x78] sm:$0xff]
    %v113 = vld [vmem:[#allocation2 + $0x80] sm:$0xff]
    %v114 = vld [vmem:[#allocation2 + $0x88] sm:$0xff]
    %v115 = vld [vmem:[#allocation2 + $0x90] sm:$0xff]
    %v116 = vld [vmem:[#allocation2 + $0x98] sm:$0xff]
    %v117 = vld [vmem:[#allocation2 + $0xa0] sm:$0xff]
    %v118 = vld [vmem:[#allocation2 + $0xa8] sm:$0xff]
    %v119 = vld [vmem:[#allocation2 + $0xb0] sm:$0xff]
    %v120 = vld [vmem:[#allocation2 + $0xb8] sm:$0xff]
    %v121 = vld [vmem:[#allocation2 + $0xc0] sm:$0xff]
    %v122 = vld [vmem:[#allocation2 + $0xc8] sm:$0xff]
    %v123 = vld [vmem:[#allocation2 + $0xd0] sm:$0xff]
    %v124 = vld [vmem:[#allocation2 + $0xd8] sm:$0xff]
    %v125 = vld [vmem:[#allocation2 + $0xe0] sm:$0xff]
    %v126 = vld [vmem:[#allocation2 + $0xe8] sm:$0xff]
    %v127 = vld [vmem:[#allocation2 + $0xf0] sm:$0xff]
    %v128 = vld [vmem:[#allocation2 + $0xf8] sm:$0xff]
    %v129 = vld [vmem:[%s2] sm:$0xf]
    %v131 = vperm.slane %v129, 0
    %v132 = vperm.slane %v129, 1
    %v133 = vperm.slane %v129, 2
    %v134 = vperm.slane %v129, 3
    %v171 = vunpack.c.l.b16 %v97
    %v172 = vunpack.c.h.b16 %v97
    %v173 = vunpack.c.l.b16 %v98
    %v174 = vunpack.c.h.b16 %v98
    %v175 = vunpack.c.l.b16 %v99
    %v176 = vunpack.c.h.b16 %v99
    %v177 = vunpack.c.l.b16 %v100
    %v178 = vunpack.c.h.b16 %v100
    %v179 = vunpack.c.l.b16 %v101
    %v180 = vunpack.c.h.b16 %v101
    %v181 = vunpack.c.l.b16 %v102
    %v182 = vunpack.c.h.b16 %v102
    %v183 = vunpack.c.l.b16 %v103
    %v184 = vunpack.c.h.b16 %v103
    %v185 = vunpack.c.l.b16 %v104
    %v186 = vunpack.c.h.b16 %v104
    %v187 = vunpack.c.l.b16 %v105
    %v188 = vunpack.c.h.b16 %v105
    %v189 = vunpack.c.l.b16 %v106
    %v190 = vunpack.c.h.b16 %v106
    %v191 = vunpack.c.l.b16 %v107
    %v192 = vunpack.c.h.b16 %v107
    %v193 = vunpack.c.l.b16 %v108
    %v194 = vunpack.c.h.b16 %v108
    %v195 = vunpack.c.l.b16 %v109
    %v196 = vunpack.c.h.b16 %v109
    %v197 = vunpack.c.l.b16 %v110
    %v198 = vunpack.c.h.b16 %v110
    %v199 = vunpack.c.l.b16 %v111
    %v200 = vunpack.c.h.b16 %v111
    %v201 = vunpack.c.l.b16 %v112
    %v202 = vunpack.c.h.b16 %v112
    %v203 = vunpack.c.l.b16 %v113
    %v204 = vunpack.c.h.b16 %v113
    %v205 = vunpack.c.l.b16 %v114
    %v206 = vunpack.c.h.b16 %v114
    %v207 = vunpack.c.l.b16 %v115
    %v208 = vunpack.c.h.b16 %v115
    %v209 = vunpack.c.l.b16 %v116
    %v210 = vunpack.c.h.b16 %v116
    %v211 = vunpack.c.l.b16 %v117
    %v212 = vunpack.c.h.b16 %v117
    %v213 = vunpack.c.l.b16 %v118
    %v214 = vunpack.c.h.b16 %v118
    %v215 = vunpack.c.l.b16 %v119
    %v216 = vunpack.c.h.b16 %v119
    %v217 = vunpack.c.l.b16 %v120
    %v218 = vunpack.c.h.b16 %v120
    %v219 = vunpack.c.l.b16 %v121
    %v220 = vunpack.c.h.b16 %v121
    %v221 = vunpack.c.l.b16 %v122
    %v222 = vunpack.c.h.b16 %v122
    %v223 = vunpack.c.l.b16 %v123
    %v224 = vunpack.c.h.b16 %v123
    %v225 = vunpack.c.l.b16 %v124
    %v226 = vunpack.c.h.b16 %v124
    %v227 = vunpack.c.l.b16 %v125
    %v228 = vunpack.c.h.b16 %v125
    %v229 = vunpack.c.l.b16 %v126
    %v230 = vunpack.c.h.b16 %v126
    %v231 = vunpack.c.l.b16 %v127
    %v232 = vunpack.c.h.b16 %v127
    %v233 = vunpack.c.l.b16 %v128
    %v234 = vunpack.c.h.b16 %v128
    %v235 = vpack.c.b16 %v175, %v171
    %v236 = vpack.c.b16 %v176, %v172
    %v237 = vpack.c.b16 %v177, %v173
    %v238 = vpack.c.b16 %v178, %v174
    %v239 = vpack.c.b16 %v183, %v179
    %v240 = vpack.c.b16 %v184, %v180
    %v241 = vpack.c.b16 %v185, %v181
    %v242 = vpack.c.b16 %v186, %v182
    %v243 = vpack.c.b16 %v191, %v187
    %v244 = vpack.c.b16 %v192, %v188
    %v245 = vpack.c.b16 %v193, %v189
    %v246 = vpack.c.b16 %v194, %v190
    %v247 = vpack.c.b16 %v199, %v195
    %v248 = vpack.c.b16 %v200, %v196
    %v249 = vpack.c.b16 %v201, %v197
    %v250 = vpack.c.b16 %v202, %v198
    %v251 = vpack.c.b16 %v207, %v203
    %v252 = vpack.c.b16 %v208, %v204
    %v253 = vpack.c.b16 %v209, %v205
    %v254 = vpack.c.b16 %v210, %v206
    %v255 = vpack.c.b16 %v215, %v211
    %v256 = vpack.c.b16 %v216, %v212
    %v257 = vpack.c.b16 %v217, %v213
    %v258 = vpack.c.b16 %v218, %v214
    %v259 = vpack.c.b16 %v223, %v219
    %v260 = vpack.c.b16 %v224, %v220
    %v261 = vpack.c.b16 %v225, %v221
    %v262 = vpack.c.b16 %v226, %v222
    %v263 = vpack.c.b16 %v231, %v227
    %v264 = vpack.c.b16 %v232, %v228
    %v265 = vpack.c.b16 %v233, %v229
    %v266 = vpack.c.b16 %v234, %v230
    %299 = vmatpush.bf16.msra.mxu0 %v263
    %300 = vmatpush.bf16.msra.mxu0 %v259
    %301 = vmatpush.bf16.msra.mxu0 %v255
    %302 = vmatpush.bf16.msra.mxu0 %v251
    %303 = vmatpush.bf16.msra.mxu0 %v247
    %304 = vmatpush.bf16.msra.mxu0 %v243
    %305 = vmatpush.bf16.msra.mxu0 %v239
    %306 = vmatpush.bf16.msra.mxu0 %v235
    %307 = vmatmul.bf16.gmra.mxu0 %v96
    %v308 = vpop.f32.mrf.mxu0
    %v309 = vadd.f32 %v131, %v308
    %v310 = vpop.f32.mrf.mxu0
    %311 = vdwg.mxu0
    %312 = vmatpush.bf16.msra.mxu0 %v264
    %313 = vmatpush.bf16.msra.mxu0 %v260
    %314 = vmatpush.bf16.msra.mxu0 %v256
    %315 = vmatpush.bf16.msra.mxu0 %v252
    %316 = vmatpush.bf16.msra.mxu0 %v248
    %317 = vmatpush.bf16.msra.mxu0 %v244
    %318 = vmatpush.bf16.msra.mxu0 %v240
    %319 = vmatpush.bf16.msra.mxu0 %v236
    %320 = vmatmul.bf16.gmra.mxu0 %v96
    %v321 = vpop.f32.mrf.mxu0
    %v322 = vadd.f32 %v132, %v321
    %v323 = vpop.f32.mrf.mxu0
    %324 = vdwg.mxu0
    %325 = vmatpush.bf16.msra.mxu0 %v265
    %326 = vmatpush.bf16.msra.mxu0 %v261
    %327 = vmatpush.bf16.msra.mxu0 %v257
    %328 = vmatpush.bf16.msra.mxu0 %v253
    %329 = vmatpush.bf16.msra.mxu0 %v249
    %330 = vmatpush.bf16.msra.mxu0 %v245
    %331 = vmatpush.bf16.msra.mxu0 %v241
    %332 = vmatpush.bf16.msra.mxu0 %v237
    %333 = vmatmul.bf16.gmra.mxu0 %v96
    %v334 = vpop.f32.mrf.mxu0
    %v335 = vadd.f32 %v133, %v334
    %v336 = vpop.f32.mrf.mxu0
    %337 = vdwg.mxu0
    %338 = vmatpush.bf16.msra.mxu0 %v266
    %339 = vmatpush.bf16.msra.mxu0 %v262
    %340 = vmatpush.bf16.msra.mxu0 %v258
    %341 = vmatpush.bf16.msra.mxu0 %v254
    %342 = vmatpush.bf16.msra.mxu0 %v250
    %343 = vmatpush.bf16.msra.mxu0 %v246
    %344 = vmatpush.bf16.msra.mxu0 %v242
    %345 = vmatpush.bf16.msra.mxu0 %v238
    %346 = vmatmul.bf16.gmra.mxu0 %v96
    %v347 = vpop.f32.mrf.mxu0
    %v348 = vadd.f32 %v134, %v347
    %v349 = vpop.f32.mrf.mxu0
    %350 = vdwg.mxu0
    %v351 = vmax.f32 %v309, 0.0
    %v352 = vmax.f32 %v322, 0.0
    %v353 = vmax.f32 %v335, 0.0
    %v354 = vmax.f32 %v348, 0.0
    %v355 = vpack.c.bf16 %v351, %v351
    %v356 = vpack.c.bf16 %v352, %v352
    %v357 = vpack.c.bf16 %v353, %v353
    %v358 = vpack.c.bf16 %v354, %v354
    %v359 = vld [vmem:[#allocation4] sm:$0xff]
    %v360 = vld [vmem:[#allocation4 + $0x8] sm:$0xff]
    %v361 = vld [vmem:[#allocation4 + $0x10] sm:$0xff]
    %v362 = vld [vmem:[#allocation4 + $0x18] sm:$0xff]
    %v363 = vld [vmem:[#allocation4 + $0x20] sm:$0xff]
    %v364 = vld [vmem:[#allocation4 + $0x28] sm:$0xff]
    %v365 = vld [vmem:[#allocation4 + $0x30] sm:$0xff]
    %v366 = vld [vmem:[#allocation4 + $0x38] sm:$0xff]
    %v367 = vld [vmem:[#allocation4 + $0x40] sm:$0xff]
    %v368 = vld [vmem:[#allocation4 + $0x48] sm:$0xff]
    %v369 = vld [vmem:[#allocation4 + $0x50] sm:$0xff]
    %v370 = vld [vmem:[#allocation4 + $0x58] sm:$0xff]
    %v371 = vld [vmem:[#allocation4 + $0x60] sm:$0xff]
    %v372 = vld [vmem:[#allocation4 + $0x68] sm:$0xff]
    %v373 = vld [vmem:[#allocation4 + $0x70] sm:$0xff]
    %v374 = vld [vmem:[#allocation4 + $0x78] sm:$0xff]
    %v375 = vld [vmem:[#allocation4 + $0x80] sm:$0xff]
    %v376 = vld [vmem:[#allocation4 + $0x88] sm:$0xff]
    %v377 = vld [vmem:[#allocation4 + $0x90] sm:$0xff]
    %v378 = vld [vmem:[#allocation4 + $0x98] sm:$0xff]
    %v379 = vld [vmem:[#allocation4 + $0xa0] sm:$0xff]
    %v380 = vld [vmem:[#allocation4 + $0xa8] sm:$0xff]
    %v381 = vld [vmem:[#allocation4 + $0xb0] sm:$0xff]
    %v382 = vld [vmem:[#allocation4 + $0xb8] sm:$0xff]
    %v383 = vld [vmem:[#allocation4 + $0xc0] sm:$0xff]
    %v384 = vld [vmem:[#allocation4 + $0xc8] sm:$0xff]
    %v385 = vld [vmem:[#allocation4 + $0xd0] sm:$0xff]
    %v386 = vld [vmem:[#allocation4 + $0xd8] sm:$0xff]
    %v387 = vld [vmem:[#allocation4 + $0xe0] sm:$0xff]
    %v388 = vld [vmem:[#allocation4 + $0xe8] sm:$0xff]
    %v389 = vld [vmem:[#allocation4 + $0xf0] sm:$0xff]
    %v390 = vld [vmem:[#allocation4 + $0xf8] sm:$0xff]
    %v391 = vld [vmem:[#allocation4 + $0x100] sm:$0xff]
    %v392 = vld [vmem:[#allocation4 + $0x108] sm:$0xff]
    %v393 = vld [vmem:[#allocation4 + $0x110] sm:$0xff]
    %v394 = vld [vmem:[#allocation4 + $0x118] sm:$0xff]
    %v395 = vld [vmem:[#allocation4 + $0x120] sm:$0xff]
    %v396 = vld [vmem:[#allocation4 + $0x128] sm:$0xff]
    %v397 = vld [vmem:[#allocation4 + $0x130] sm:$0xff]
    %v398 = vld [vmem:[#allocation4 + $0x138] sm:$0xff]
    %v399 = vld [vmem:[#allocation4 + $0x140] sm:$0xff]
    %v400 = vld [vmem:[#allocation4 + $0x148] sm:$0xff]
    %v401 = vld [vmem:[#allocation4 + $0x150] sm:$0xff]
    %v402 = vld [vmem:[#allocation4 + $0x158] sm:$0xff]
    %v403 = vld [vmem:[#allocation4 + $0x160] sm:$0xff]
    %v404 = vld [vmem:[#allocation4 + $0x168] sm:$0xff]
    %v405 = vld [vmem:[#allocation4 + $0x170] sm:$0xff]
    %v406 = vld [vmem:[#allocation4 + $0x178] sm:$0xff]
    %v407 = vld [vmem:[#allocation4 + $0x180] sm:$0xff]
    %v408 = vld [vmem:[#allocation4 + $0x188] sm:$0xff]
    %v409 = vld [vmem:[#allocation4 + $0x190] sm:$0xff]
    %v410 = vld [vmem:[#allocation4 + $0x198] sm:$0xff]
    %v411 = vld [vmem:[#allocation4 + $0x1a0] sm:$0xff]
    %v412 = vld [vmem:[#allocation4 + $0x1a8] sm:$0xff]
    %v413 = vld [vmem:[#allocation4 + $0x1b0] sm:$0xff]
    %v414 = vld [vmem:[#allocation4 + $0x1b8] sm:$0xff]
    %v415 = vld [vmem:[#allocation4 + $0x1c0] sm:$0xff]
    %v416 = vld [vmem:[#allocation4 + $0x1c8] sm:$0xff]
    %v417 = vld [vmem:[#allocation4 + $0x1d0] sm:$0xff]
    %v418 = vld [vmem:[#allocation4 + $0x1d8] sm:$0xff]
    %v419 = vld [vmem:[#allocation4 + $0x1e0] sm:$0xff]
    %v420 = vld [vmem:[#allocation4 + $0x1e8] sm:$0xff]
    %v421 = vld [vmem:[#allocation4 + $0x1f0] sm:$0xff]
    %v422 = vld [vmem:[#allocation4 + $0x1f8] sm:$0xff]
    %v487 = vunpack.c.l.b16 %v359
    %v488 = vunpack.c.h.b16 %v359
    %v489 = vunpack.c.l.b16 %v360
    %v490 = vunpack.c.h.b16 %v360
    %v491 = vunpack.c.l.b16 %v361
    %v492 = vunpack.c.h.b16 %v361
    %v493 = vunpack.c.l.b16 %v362
    %v494 = vunpack.c.h.b16 %v362
    %v495 = vunpack.c.l.b16 %v363
    %v496 = vunpack.c.h.b16 %v363
    %v497 = vunpack.c.l.b16 %v364
    %v498 = vunpack.c.h.b16 %v364
    %v499 = vunpack.c.l.b16 %v365
    %v500 = vunpack.c.h.b16 %v365
    %v501 = vunpack.c.l.b16 %v366
    %v502 = vunpack.c.h.b16 %v366
    %v503 = vunpack.c.l.b16 %v367
    %v504 = vunpack.c.h.b16 %v367
    %v505 = vunpack.c.l.b16 %v368
    %v506 = vunpack.c.h.b16 %v368
    %v507 = vunpack.c.l.b16 %v369
    %v508 = vunpack.c.h.b16 %v369
    %v509 = vunpack.c.l.b16 %v370
    %v510 = vunpack.c.h.b16 %v370
    %v511 = vunpack.c.l.b16 %v371
    %v512 = vunpack.c.h.b16 %v371
    %v513 = vunpack.c.l.b16 %v372
    %v514 = vunpack.c.h.b16 %v372
    %v515 = vunpack.c.l.b16 %v373
    %v516 = vunpack.c.h.b16 %v373
    %v517 = vunpack.c.l.b16 %v374
    %v518 = vunpack.c.h.b16 %v374
    %v519 = vunpack.c.l.b16 %v375
    %v520 = vunpack.c.h.b16 %v375
    %v521 = vunpack.c.l.b16 %v376
    %v522 = vunpack.c.h.b16 %v376
    %v523 = vunpack.c.l.b16 %v377
    %v524 = vunpack.c.h.b16 %v377
    %v525 = vunpack.c.l.b16 %v378
    %v526 = vunpack.c.h.b16 %v378
    %v527 = vunpack.c.l.b16 %v379
    %v528 = vunpack.c.h.b16 %v379
    %v529 = vunpack.c.l.b16 %v380
    %v530 = vunpack.c.h.b16 %v380
    %v531 = vunpack.c.l.b16 %v381
    %v532 = vunpack.c.h.b16 %v381
    %v533 = vunpack.c.l.b16 %v382
    %v534 = vunpack.c.h.b16 %v382
    %v535 = vunpack.c.l.b16 %v383
    %v536 = vunpack.c.h.b16 %v383
    %v537 = vunpack.c.l.b16 %v384
    %v538 = vunpack.c.h.b16 %v384
    %v539 = vunpack.c.l.b16 %v385
    %v540 = vunpack.c.h.b16 %v385
    %v541 = vunpack.c.l.b16 %v386
    %v542 = vunpack.c.h.b16 %v386
    %v543 = vunpack.c.l.b16 %v387
    %v544 = vunpack.c.h.b16 %v387
    %v545 = vunpack.c.l.b16 %v388
    %v546 = vunpack.c.h.b16 %v388
    %v547 = vunpack.c.l.b16 %v389
    %v548 = vunpack.c.h.b16 %v389
    %v549 = vunpack.c.l.b16 %v390
    %v550 = vunpack.c.h.b16 %v390
    %v551 = vunpack.c.l.b16 %v391
    %v552 = vunpack.c.h.b16 %v391
    %v553 = vunpack.c.l.b16 %v392
    %v554 = vunpack.c.h.b16 %v392
    %v555 = vunpack.c.l.b16 %v393
    %v556 = vunpack.c.h.b16 %v393
    %v557 = vunpack.c.l.b16 %v394
    %v558 = vunpack.c.h.b16 %v394
    %v559 = vunpack.c.l.b16 %v395
    %v560 = vunpack.c.h.b16 %v395
    %v561 = vunpack.c.l.b16 %v396
    %v562 = vunpack.c.h.b16 %v396
    %v563 = vunpack.c.l.b16 %v397
    %v564 = vunpack.c.h.b16 %v397
    %v565 = vunpack.c.l.b16 %v398
    %v566 = vunpack.c.h.b16 %v398
    %v567 = vunpack.c.l.b16 %v399
    %v568 = vunpack.c.h.b16 %v399
    %v569 = vunpack.c.l.b16 %v400
    %v570 = vunpack.c.h.b16 %v400
    %v571 = vunpack.c.l.b16 %v401
    %v572 = vunpack.c.h.b16 %v401
    %v573 = vunpack.c.l.b16 %v402
    %v574 = vunpack.c.h.b16 %v402
    %v575 = vunpack.c.l.b16 %v403
    %v576 = vunpack.c.h.b16 %v403
    %v577 = vunpack.c.l.b16 %v404
    %v578 = vunpack.c.h.b16 %v404
    %v579 = vunpack.c.l.b16 %v405
    %v580 = vunpack.c.h.b16 %v405
    %v581 = vunpack.c.l.b16 %v406
    %v582 = vunpack.c.h.b16 %v406
    %v583 = vunpack.c.l.b16 %v407
    %v584 = vunpack.c.h.b16 %v407
    %v585 = vunpack.c.l.b16 %v408
    %v586 = vunpack.c.h.b16 %v408
    %v587 = vunpack.c.l.b16 %v409
    %v588 = vunpack.c.h.b16 %v409
    %v589 = vunpack.c.l.b16 %v410
    %v590 = vunpack.c.h.b16 %v410
    %v591 = vunpack.c.l.b16 %v411
    %v592 = vunpack.c.h.b16 %v411
    %v593 = vunpack.c.l.b16 %v412
    %v594 = vunpack.c.h.b16 %v412
    %v595 = vunpack.c.l.b16 %v413
    %v596 = vunpack.c.h.b16 %v413
    %v597 = vunpack.c.l.b16 %v414
    %v598 = vunpack.c.h.b16 %v414
    %v599 = vunpack.c.l.b16 %v415
    %v600 = vunpack.c.h.b16 %v415
    %v601 = vunpack.c.l.b16 %v416
    %v602 = vunpack.c.h.b16 %v416
    %v603 = vunpack.c.l.b16 %v417
    %v604 = vunpack.c.h.b16 %v417
    %v605 = vunpack.c.l.b16 %v418
    %v606 = vunpack.c.h.b16 %v418
    %v607 = vunpack.c.l.b16 %v419
    %v608 = vunpack.c.h.b16 %v419
    %v609 = vunpack.c.l.b16 %v420
    %v610 = vunpack.c.h.b16 %v420
    %v611 = vunpack.c.l.b16 %v421
    %v612 = vunpack.c.h.b16 %v421
    %v613 = vunpack.c.l.b16 %v422
    %v614 = vunpack.c.h.b16 %v422
    %v615 = vpack.c.b16 %v489, %v487
    %v616 = vpack.c.b16 %v490, %v488
    %v617 = vpack.c.b16 %v493, %v491
    %v618 = vpack.c.b16 %v494, %v492
    %v619 = vpack.c.b16 %v497, %v495
    %v620 = vpack.c.b16 %v498, %v496
    %v621 = vpack.c.b16 %v501, %v499
    %v622 = vpack.c.b16 %v502, %v500
    %v623 = vpack.c.b16 %v505, %v503
    %v624 = vpack.c.b16 %v506, %v504
    %v625 = vpack.c.b16 %v509, %v507
    %v626 = vpack.c.b16 %v510, %v508
    %v627 = vpack.c.b16 %v513, %v511
    %v628 = vpack.c.b16 %v514, %v512
    %v629 = vpack.c.b16 %v517, %v515
    %v630 = vpack.c.b16 %v518, %v516
    %v631 = vpack.c.b16 %v521, %v519
    %v632 = vpack.c.b16 %v522, %v520
    %v633 = vpack.c.b16 %v525, %v523
    %v634 = vpack.c.b16 %v526, %v524
    %v635 = vpack.c.b16 %v529, %v527
    %v636 = vpack.c.b16 %v530, %v528
    %v637 = vpack.c.b16 %v533, %v531
    %v638 = vpack.c.b16 %v534, %v532
    %v639 = vpack.c.b16 %v537, %v535
    %v640 = vpack.c.b16 %v538, %v536
    %v641 = vpack.c.b16 %v541, %v539
    %v642 = vpack.c.b16 %v542, %v540
    %v643 = vpack.c.b16 %v545, %v543
    %v644 = vpack.c.b16 %v546, %v544
    %v645 = vpack.c.b16 %v549, %v547
    %v646 = vpack.c.b16 %v550, %v548
    %v647 = vpack.c.b16 %v553, %v551
    %v648 = vpack.c.b16 %v554, %v552
    %v649 = vpack.c.b16 %v557, %v555
    %v650 = vpack.c.b16 %v558, %v556
    %v651 = vpack.c.b16 %v561, %v559
    %v652 = vpack.c.b16 %v562, %v560
    %v653 = vpack.c.b16 %v565, %v563
    %v654 = vpack.c.b16 %v566, %v564
    %v655 = vpack.c.b16 %v569, %v567
    %v656 = vpack.c.b16 %v570, %v568
    %v657 = vpack.c.b16 %v573, %v571
    %v658 = vpack.c.b16 %v574, %v572
    %v659 = vpack.c.b16 %v577, %v575
    %v660 = vpack.c.b16 %v578, %v576
    %v661 = vpack.c.b16 %v581, %v579
    %v662 = vpack.c.b16 %v582, %v580
    %v663 = vpack.c.b16 %v585, %v583
    %v664 = vpack.c.b16 %v586, %v584
    %v665 = vpack.c.b16 %v589, %v587
    %v666 = vpack.c.b16 %v590, %v588
    %v667 = vpack.c.b16 %v593, %v591
    %v668 = vpack.c.b16 %v594, %v592
    %v669 = vpack.c.b16 %v597, %v595
    %v670 = vpack.c.b16 %v598, %v596
    %v671 = vpack.c.b16 %v601, %v599
    %v672 = vpack.c.b16 %v602, %v600
    %v673 = vpack.c.b16 %v605, %v603
    %v674 = vpack.c.b16 %v606, %v604
    %v675 = vpack.c.b16 %v609, %v607
    %v676 = vpack.c.b16 %v610, %v608
    %v677 = vpack.c.b16 %v613, %v611
    %v678 = vpack.c.b16 %v614, %v612
    %743 = vmatpush.bf16.msra.mxu0 %v629
    %744 = vmatpush.bf16.msra.mxu0 %v627
    %745 = vmatpush.bf16.msra.mxu0 %v625
    %746 = vmatpush.bf16.msra.mxu0 %v623
    %747 = vmatpush.bf16.msra.mxu0 %v621
    %748 = vmatpush.bf16.msra.mxu0 %v619
    %749 = vmatpush.bf16.msra.mxu0 %v617
    %750 = vmatpush.bf16.msra.mxu0 %v615
    %751 = vmatmul.bf16.gmra.mxu0 %v355
    %v752 = vpop.f32.mrf.mxu0
    %v753 = vadd.f32 0.0, %v752
    %v754 = vpop.f32.mrf.mxu0
    %755 = vdwg.mxu0
    %756 = vmatpush.bf16.msra.mxu0 %v645
    %757 = vmatpush.bf16.msra.mxu0 %v643
    %758 = vmatpush.bf16.msra.mxu0 %v641
    %759 = vmatpush.bf16.msra.mxu0 %v639
    %760 = vmatpush.bf16.msra.mxu0 %v637
    %761 = vmatpush.bf16.msra.mxu0 %v635
    %762 = vmatpush.bf16.msra.mxu0 %v633
    %763 = vmatpush.bf16.msra.mxu0 %v631
    %764 = vmatmul.bf16.gmra.mxu0 %v356
    %v765 = vpop.f32.mrf.mxu0
    %v766 = vadd.f32 %v753, %v765
    %v767 = vpop.f32.mrf.mxu0
    %768 = vdwg.mxu0
    %769 = vmatpush.bf16.msra.mxu0 %v661
    %770 = vmatpush.bf16.msra.mxu0 %v659
    %771 = vmatpush.bf16.msra.mxu0 %v657
    %772 = vmatpush.bf16.msra.mxu0 %v655
    %773 = vmatpush.bf16.msra.mxu0 %v653
    %774 = vmatpush.bf16.msra.mxu0 %v651
    %775 = vmatpush.bf16.msra.mxu0 %v649
    %776 = vmatpush.bf16.msra.mxu0 %v647
    %777 = vmatmul.bf16.gmra.mxu0 %v357
    %v778 = vpop.f32.mrf.mxu0
    %v779 = vadd.f32 %v766, %v778
    %v780 = vpop.f32.mrf.mxu0
    %781 = vdwg.mxu0
    %782 = vmatpush.bf16.msra.mxu0 %v677
    %783 = vmatpush.bf16.msra.mxu0 %v675
    %784 = vmatpush.bf16.msra.mxu0 %v673
    %785 = vmatpush.bf16.msra.mxu0 %v671
    %786 = vmatpush.bf16.msra.mxu0 %v669
    %787 = vmatpush.bf16.msra.mxu0 %v667
    %788 = vmatpush.bf16.msra.mxu0 %v665
    %789 = vmatpush.bf16.msra.mxu0 %v663
    %790 = vmatmul.bf16.gmra.mxu0 %v358
    %v791 = vpop.f32.mrf.mxu0
    %v792 = vadd.f32 %v779, %v791
    %v793 = vpop.f32.mrf.mxu0
    %794 = vdwg.mxu0
    %795 = vmatpush.bf16.msra.mxu0 %v630
    %796 = vmatpush.bf16.msra.mxu0 %v628
    %797 = vmatpush.bf16.msra.mxu0 %v626
    %798 = vmatpush.bf16.msra.mxu0 %v624
    %799 = vmatpush.bf16.msra.mxu0 %v622
    %800 = vmatpush.bf16.msra.mxu0 %v620
    %801 = vmatpush.bf16.msra.mxu0 %v618
    %802 = vmatpush.bf16.msra.mxu0 %v616
    %803 = vmatmul.bf16.gmra.mxu0 %v355
    %v804 = vpop.f32.mrf.mxu0
    %v805 = vadd.f32 0.0, %v804
    %v806 = vpop.f32.mrf.mxu0
    %807 = vdwg.mxu0
    %808 = vmatpush.bf16.msra.mxu0 %v646
    %809 = vmatpush.bf16.msra.mxu0 %v644
    %810 = vmatpush.bf16.msra.mxu0 %v642
    %811 = vmatpush.bf16.msra.mxu0 %v640
    %812 = vmatpush.bf16.msra.mxu0 %v638
    %813 = vmatpush.bf16.msra.mxu0 %v636
    %814 = vmatpush.bf16.msra.mxu0 %v634
    %815 = vmatpush.bf16.msra.mxu0 %v632
    %816 = vmatmul.bf16.gmra.mxu0 %v356
    %v817 = vpop.f32.mrf.mxu0
    %v818 = vadd.f32 %v805, %v817
    %v819 = vpop.f32.mrf.mxu0
    %820 = vdwg.mxu0
    %821 = vmatpush.bf16.msra.mxu0 %v662
    %822 = vmatpush.bf16.msra.mxu0 %v660
    %823 = vmatpush.bf16.msra.mxu0 %v658
    %824 = vmatpush.bf16.msra.mxu0 %v656
    %825 = vmatpush.bf16.msra.mxu0 %v654
    %826 = vmatpush.bf16.msra.mxu0 %v652
    %827 = vmatpush.bf16.msra.mxu0 %v650
    %828 = vmatpush.bf16.msra.mxu0 %v648
    %829 = vmatmul.bf16.gmra.mxu0 %v357
    %v830 = vpop.f32.mrf.mxu0
    %v831 = vadd.f32 %v818, %v830
    %v832 = vpop.f32.mrf.mxu0
    %833 = vdwg.mxu0
    %834 = vmatpush.bf16.msra.mxu0 %v678
    %835 = vmatpush.bf16.msra.mxu0 %v676
    %836 = vmatpush.bf16.msra.mxu0 %v674
    %837 = vmatpush.bf16.msra.mxu0 %v672
    %838 = vmatpush.bf16.msra.mxu0 %v670
    %839 = vmatpush.bf16.msra.mxu0 %v668
    %840 = vmatpush.bf16.msra.mxu0 %v666
    %841 = vmatpush.bf16.msra.mxu0 %v664
    %842 = vmatmul.bf16.gmra.mxu0 %v358
    %v843 = vpop.f32.mrf.mxu0
    %v844 = vadd.f32 %v831, %v843
    %v845 = vpop.f32.mrf.mxu0
    %846 = vdwg.mxu0
    %s847 = scalar_lea.vmem [#allocation4], 512
    %v848 = vld [vmem:[%s847] sm:$0xff]
    %v849 = vld [vmem:[%s847 + $0x8] sm:$0xff]
    %v850 = vld [vmem:[%s847 + $0x10] sm:$0xff]
    %v851 = vld [vmem:[%s847 + $0x18] sm:$0xff]
    %v852 = vld [vmem:[%s847 + $0x20] sm:$0xff]
    %v853 = vld [vmem:[%s847 + $0x28] sm:$0xff]
    %v854 = vld [vmem:[%s847 + $0x30] sm:$0xff]
    %v855 = vld [vmem:[%s847 + $0x38] sm:$0xff]
    %v856 = vld [vmem:[%s847 + $0x40] sm:$0xff]
    %v857 = vld [vmem:[%s847 + $0x48] sm:$0xff]
    %v858 = vld [vmem:[%s847 + $0x50] sm:$0xff]
    %v859 = vld [vmem:[%s847 + $0x58] sm:$0xff]
    %v860 = vld [vmem:[%s847 + $0x60] sm:$0xff]
    %v861 = vld [vmem:[%s847 + $0x68] sm:$0xff]
    %v862 = vld [vmem:[%s847 + $0x70] sm:$0xff]
    %v863 = vld [vmem:[%s847 + $0x78] sm:$0xff]
    %v864 = vld [vmem:[%s847 + $0x80] sm:$0xff]
    %v865 = vld [vmem:[%s847 + $0x88] sm:$0xff]
    %v866 = vld [vmem:[%s847 + $0x90] sm:$0xff]
    %v867 = vld [vmem:[%s847 + $0x98] sm:$0xff]
    %v868 = vld [vmem:[%s847 + $0xa0] sm:$0xff]
    %v869 = vld [vmem:[%s847 + $0xa8] sm:$0xff]
    %v870 = vld [vmem:[%s847 + $0xb0] sm:$0xff]
    %v871 = vld [vmem:[%s847 + $0xb8] sm:$0xff]
    %v872 = vld [vmem:[%s847 + $0xc0] sm:$0xff]
    %v873 = vld [vmem:[%s847 + $0xc8] sm:$0xff]
    %v874 = vld [vmem:[%s847 + $0xd0] sm:$0xff]
    %v875 = vld [vmem:[%s847 + $0xd8] sm:$0xff]
    %v876 = vld [vmem:[%s847 + $0xe0] sm:$0xff]
    %v877 = vld [vmem:[%s847 + $0xe8] sm:$0xff]
    %v878 = vld [vmem:[%s847 + $0xf0] sm:$0xff]
    %v879 = vld [vmem:[%s847 + $0xf8] sm:$0xff]
    %v880 = vld [vmem:[%s847 + $0x100] sm:$0xff]
    %v881 = vld [vmem:[%s847 + $0x108] sm:$0xff]
    %v882 = vld [vmem:[%s847 + $0x110] sm:$0xff]
    %v883 = vld [vmem:[%s847 + $0x118] sm:$0xff]
    %v884 = vld [vmem:[%s847 + $0x120] sm:$0xff]
    %v885 = vld [vmem:[%s847 + $0x128] sm:$0xff]
    %v886 = vld [vmem:[%s847 + $0x130] sm:$0xff]
    %v887 = vld [vmem:[%s847 + $0x138] sm:$0xff]
    %v888 = vld [vmem:[%s847 + $0x140] sm:$0xff]
    %v889 = vld [vmem:[%s847 + $0x148] sm:$0xff]
    %v890 = vld [vmem:[%s847 + $0x150] sm:$0xff]
    %v891 = vld [vmem:[%s847 + $0x158] sm:$0xff]
    %v892 = vld [vmem:[%s847 + $0x160] sm:$0xff]
    %v893 = vld [vmem:[%s847 + $0x168] sm:$0xff]
    %v894 = vld [vmem:[%s847 + $0x170] sm:$0xff]
    %v895 = vld [vmem:[%s847 + $0x178] sm:$0xff]
    %v896 = vld [vmem:[%s847 + $0x180] sm:$0xff]
    %v897 = vld [vmem:[%s847 + $0x188] sm:$0xff]
    %v898 = vld [vmem:[%s847 + $0x190] sm:$0xff]
    %v899 = vld [vmem:[%s847 + $0x198] sm:$0xff]
    %v900 = vld [vmem:[%s847 + $0x1a0] sm:$0xff]
    %v901 = vld [vmem:[%s847 + $0x1a8] sm:$0xff]
    %v902 = vld [vmem:[%s847 + $0x1b0] sm:$0xff]
    %v903 = vld [vmem:[%s847 + $0x1b8] sm:$0xff]
    %v904 = vld [vmem:[%s847 + $0x1c0] sm:$0xff]
    %v905 = vld [vmem:[%s847 + $0x1c8] sm:$0xff]
    %v906 = vld [vmem:[%s847 + $0x1d0] sm:$0xff]
    %v907 = vld [vmem:[%s847 + $0x1d8] sm:$0xff]
    %v908 = vld [vmem:[%s847 + $0x1e0] sm:$0xff]
    %v909 = vld [vmem:[%s847 + $0x1e8] sm:$0xff]
    %v910 = vld [vmem:[%s847 + $0x1f0] sm:$0xff]
    %v911 = vld [vmem:[%s847 + $0x1f8] sm:$0xff]
    %v976 = vunpack.c.l.b16 %v848
    %v977 = vunpack.c.h.b16 %v848
    %v978 = vunpack.c.l.b16 %v849
    %v979 = vunpack.c.h.b16 %v849
    %v980 = vunpack.c.l.b16 %v850
    %v981 = vunpack.c.h.b16 %v850
    %v982 = vunpack.c.l.b16 %v851
    %v983 = vunpack.c.h.b16 %v851
    %v984 = vunpack.c.l.b16 %v852
    %v985 = vunpack.c.h.b16 %v852
    %v986 = vunpack.c.l.b16 %v853
    %v987 = vunpack.c.h.b16 %v853
    %v988 = vunpack.c.l.b16 %v854
    %v989 = vunpack.c.h.b16 %v854
    %v990 = vunpack.c.l.b16 %v855
    %v991 = vunpack.c.h.b16 %v855
    %v992 = vunpack.c.l.b16 %v856
    %v993 = vunpack.c.h.b16 %v856
    %v994 = vunpack.c.l.b16 %v857
    %v995 = vunpack.c.h.b16 %v857
    %v996 = vunpack.c.l.b16 %v858
    %v997 = vunpack.c.h.b16 %v858
    %v998 = vunpack.c.l.b16 %v859
    %v999 = vunpack.c.h.b16 %v859
    %v1000 = vunpack.c.l.b16 %v860
    %v1001 = vunpack.c.h.b16 %v860
    %v1002 = vunpack.c.l.b16 %v861
    %v1003 = vunpack.c.h.b16 %v861
    %v1004 = vunpack.c.l.b16 %v862
    %v1005 = vunpack.c.h.b16 %v862
    %v1006 = vunpack.c.l.b16 %v863
    %v1007 = vunpack.c.h.b16 %v863
    %v1008 = vunpack.c.l.b16 %v864
    %v1009 = vunpack.c.h.b16 %v864
    %v1010 = vunpack.c.l.b16 %v865
    %v1011 = vunpack.c.h.b16 %v865
    %v1012 = vunpack.c.l.b16 %v866
    %v1013 = vunpack.c.h.b16 %v866
    %v1014 = vunpack.c.l.b16 %v867
    %v1015 = vunpack.c.h.b16 %v867
    %v1016 = vunpack.c.l.b16 %v868
    %v1017 = vunpack.c.h.b16 %v868
    %v1018 = vunpack.c.l.b16 %v869
    %v1019 = vunpack.c.h.b16 %v869
    %v1020 = vunpack.c.l.b16 %v870
    %v1021 = vunpack.c.h.b16 %v870
    %v1022 = vunpack.c.l.b16 %v871
    %v1023 = vunpack.c.h.b16 %v871
    %v1024 = vunpack.c.l.b16 %v872
    %v1025 = vunpack.c.h.b16 %v872
    %v1026 = vunpack.c.l.b16 %v873
    %v1027 = vunpack.c.h.b16 %v873
    %v1028 = vunpack.c.l.b16 %v874
    %v1029 = vunpack.c.h.b16 %v874
    %v1030 = vunpack.c.l.b16 %v875
    %v1031 = vunpack.c.h.b16 %v875
    %v1032 = vunpack.c.l.b16 %v876
    %v1033 = vunpack.c.h.b16 %v876
    %v1034 = vunpack.c.l.b16 %v877
    %v1035 = vunpack.c.h.b16 %v877
    %v1036 = vunpack.c.l.b16 %v878
    %v1037 = vunpack.c.h.b16 %v878
    %v1038 = vunpack.c.l.b16 %v879
    %v1039 = vunpack.c.h.b16 %v879
    %v1040 = vunpack.c.l.b16 %v880
    %v1041 = vunpack.c.h.b16 %v880
    %v1042 = vunpack.c.l.b16 %v881
    %v1043 = vunpack.c.h.b16 %v881
    %v1044 = vunpack.c.l.b16 %v882
    %v1045 = vunpack.c.h.b16 %v882
    %v1046 = vunpack.c.l.b16 %v883
    %v1047 = vunpack.c.h.b16 %v883
    %v1048 = vunpack.c.l.b16 %v884
    %v1049 = vunpack.c.h.b16 %v884
    %v1050 = vunpack.c.l.b16 %v885
    %v1051 = vunpack.c.h.b16 %v885
    %v1052 = vunpack.c.l.b16 %v886
    %v1053 = vunpack.c.h.b16 %v886
    %v1054 = vunpack.c.l.b16 %v887
    %v1055 = vunpack.c.h.b16 %v887
    %v1056 = vunpack.c.l.b16 %v888
    %v1057 = vunpack.c.h.b16 %v888
    %v1058 = vunpack.c.l.b16 %v889
    %v1059 = vunpack.c.h.b16 %v889
    %v1060 = vunpack.c.l.b16 %v890
    %v1061 = vunpack.c.h.b16 %v890
    %v1062 = vunpack.c.l.b16 %v891
    %v1063 = vunpack.c.h.b16 %v891
    %v1064 = vunpack.c.l.b16 %v892
    %v1065 = vunpack.c.h.b16 %v892
    %v1066 = vunpack.c.l.b16 %v893
    %v1067 = vunpack.c.h.b16 %v893
    %v1068 = vunpack.c.l.b16 %v894
    %v1069 = vunpack.c.h.b16 %v894
    %v1070 = vunpack.c.l.b16 %v895
    %v1071 = vunpack.c.h.b16 %v895
    %v1072 = vunpack.c.l.b16 %v896
    %v1073 = vunpack.c.h.b16 %v896
    %v1074 = vunpack.c.l.b16 %v897
    %v1075 = vunpack.c.h.b16 %v897
    %v1076 = vunpack.c.l.b16 %v898
    %v1077 = vunpack.c.h.b16 %v898
    %v1078 = vunpack.c.l.b16 %v899
    %v1079 = vunpack.c.h.b16 %v899
    %v1080 = vunpack.c.l.b16 %v900
    %v1081 = vunpack.c.h.b16 %v900
    %v1082 = vunpack.c.l.b16 %v901
    %v1083 = vunpack.c.h.b16 %v901
    %v1084 = vunpack.c.l.b16 %v902
    %v1085 = vunpack.c.h.b16 %v902
    %v1086 = vunpack.c.l.b16 %v903
    %v1087 = vunpack.c.h.b16 %v903
    %v1088 = vunpack.c.l.b16 %v904
    %v1089 = vunpack.c.h.b16 %v904
    %v1090 = vunpack.c.l.b16 %v905
    %v1091 = vunpack.c.h.b16 %v905
    %v1092 = vunpack.c.l.b16 %v906
    %v1093 = vunpack.c.h.b16 %v906
    %v1094 = vunpack.c.l.b16 %v907
    %v1095 = vunpack.c.h.b16 %v907
    %v1096 = vunpack.c.l.b16 %v908
    %v1097 = vunpack.c.h.b16 %v908
    %v1098 = vunpack.c.l.b16 %v909
    %v1099 = vunpack.c.h.b16 %v909
    %v1100 = vunpack.c.l.b16 %v910
    %v1101 = vunpack.c.h.b16 %v910
    %v1102 = vunpack.c.l.b16 %v911
    %v1103 = vunpack.c.h.b16 %v911
    %v1104 = vpack.c.b16 %v978, %v976
    %v1105 = vpack.c.b16 %v979, %v977
    %v1106 = vpack.c.b16 %v982, %v980
    %v1107 = vpack.c.b16 %v983, %v981
    %v1108 = vpack.c.b16 %v986, %v984
    %v1109 = vpack.c.b16 %v987, %v985
    %v1110 = vpack.c.b16 %v990, %v988
    %v1111 = vpack.c.b16 %v991, %v989
    %v1112 = vpack.c.b16 %v994, %v992
    %v1113 = vpack.c.b16 %v995, %v993
    %v1114 = vpack.c.b16 %v998, %v996
    %v1115 = vpack.c.b16 %v999, %v997
    %v1116 = vpack.c.b16 %v1002, %v1000
    %v1117 = vpack.c.b16 %v1003, %v1001
    %v1118 = vpack.c.b16 %v1006, %v1004
    %v1119 = vpack.c.b16 %v1007, %v1005
    %v1120 = vpack.c.b16 %v1010, %v1008
    %v1121 = vpack.c.b16 %v1011, %v1009
    %v1122 = vpack.c.b16 %v1014, %v1012
    %v1123 = vpack.c.b16 %v1015, %v1013
    %v1124 = vpack.c.b16 %v1018, %v1016
    %v1125 = vpack.c.b16 %v1019, %v1017
    %v1126 = vpack.c.b16 %v1022, %v1020
    %v1127 = vpack.c.b16 %v1023, %v1021
    %v1128 = vpack.c.b16 %v1026, %v1024
    %v1129 = vpack.c.b16 %v1027, %v1025
    %v1130 = vpack.c.b16 %v1030, %v1028
    %v1131 = vpack.c.b16 %v1031, %v1029
    %v1132 = vpack.c.b16 %v1034, %v1032
    %v1133 = vpack.c.b16 %v1035, %v1033
    %v1134 = vpack.c.b16 %v1038, %v1036
    %v1135 = vpack.c.b16 %v1039, %v1037
    %v1136 = vpack.c.b16 %v1042, %v1040
    %v1137 = vpack.c.b16 %v1043, %v1041
    %v1138 = vpack.c.b16 %v1046, %v1044
    %v1139 = vpack.c.b16 %v1047, %v1045
    %v1140 = vpack.c.b16 %v1050, %v1048
    %v1141 = vpack.c.b16 %v1051, %v1049
    %v1142 = vpack.c.b16 %v1054, %v1052
    %v1143 = vpack.c.b16 %v1055, %v1053
    %v1144 = vpack.c.b16 %v1058, %v1056
    %v1145 = vpack.c.b16 %v1059, %v1057
    %v1146 = vpack.c.b16 %v1062, %v1060
    %v1147 = vpack.c.b16 %v1063, %v1061
    %v1148 = vpack.c.b16 %v1066, %v1064
    %v1149 = vpack.c.b16 %v1067, %v1065
    %v1150 = vpack.c.b16 %v1070, %v1068
    %v1151 = vpack.c.b16 %v1071, %v1069
    %v1152 = vpack.c.b16 %v1074, %v1072
    %v1153 = vpack.c.b16 %v1075, %v1073
    %v1154 = vpack.c.b16 %v1078, %v1076
    %v1155 = vpack.c.b16 %v1079, %v1077
    %v1156 = vpack.c.b16 %v1082, %v1080
    %v1157 = vpack.c.b16 %v1083, %v1081
    %v1158 = vpack.c.b16 %v1086, %v1084
    %v1159 = vpack.c.b16 %v1087, %v1085
    %v1160 = vpack.c.b16 %v1090, %v1088
    %v1161 = vpack.c.b16 %v1091, %v1089
    %v1162 = vpack.c.b16 %v1094, %v1092
    %v1163 = vpack.c.b16 %v1095, %v1093
    %v1164 = vpack.c.b16 %v1098, %v1096
    %v1165 = vpack.c.b16 %v1099, %v1097
    %v1166 = vpack.c.b16 %v1102, %v1100
    %v1167 = vpack.c.b16 %v1103, %v1101
    %1232 = vmatpush.bf16.msra.mxu0 %v1118
    %1233 = vmatpush.bf16.msra.mxu0 %v1116
    %1234 = vmatpush.bf16.msra.mxu0 %v1114
    %1235 = vmatpush.bf16.msra.mxu0 %v1112
    %1236 = vmatpush.bf16.msra.mxu0 %v1110
    %1237 = vmatpush.bf16.msra.mxu0 %v1108
    %1238 = vmatpush.bf16.msra.mxu0 %v1106
    %1239 = vmatpush.bf16.msra.mxu0 %v1104
    %1240 = vmatmul.bf16.gmra.mxu0 %v355
    %v1241 = vpop.f32.mrf.mxu0
    %v1242 = vadd.f32 0.0, %v1241
    %v1243 = vpop.f32.mrf.mxu0
    %1244 = vdwg.mxu0
    %1245 = vmatpush.bf16.msra.mxu0 %v1134
    %1246 = vmatpush.bf16.msra.mxu0 %v1132
    %1247 = vmatpush.bf16.msra.mxu0 %v1130
    %1248 = vmatpush.bf16.msra.mxu0 %v1128
    %1249 = vmatpush.bf16.msra.mxu0 %v1126
    %1250 = vmatpush.bf16.msra.mxu0 %v1124
    %1251 = vmatpush.bf16.msra.mxu0 %v1122
    %1252 = vmatpush.bf16.msra.mxu0 %v1120
    %1253 = vmatmul.bf16.gmra.mxu0 %v356
    %v1254 = vpop.f32.mrf.mxu0
    %v1255 = vadd.f32 %v1242, %v1254
    %v1256 = vpop.f32.mrf.mxu0
    %1257 = vdwg.mxu0
    %1258 = vmatpush.bf16.msra.mxu0 %v1150
    %1259 = vmatpush.bf16.msra.mxu0 %v1148
    %1260 = vmatpush.bf16.msra.mxu0 %v1146
    %1261 = vmatpush.bf16.msra.mxu0 %v1144
    %1262 = vmatpush.bf16.msra.mxu0 %v1142
    %1263 = vmatpush.bf16.msra.mxu0 %v1140
    %1264 = vmatpush.bf16.msra.mxu0 %v1138
    %1265 = vmatpush.bf16.msra.mxu0 %v1136
    %1266 = vmatmul.bf16.gmra.mxu0 %v357
    %v1267 = vpop.f32.mrf.mxu0
    %v1268 = vadd.f32 %v1255, %v1267
    %v1269 = vpop.f32.mrf.mxu0
    %1270 = vdwg.mxu0
    %1271 = vmatpush.bf16.msra.mxu0 %v1166
    %1272 = vmatpush.bf16.msra.mxu0 %v1164
    %1273 = vmatpush.bf16.msra.mxu0 %v1162
    %1274 = vmatpush.bf16.msra.mxu0 %v1160
    %1275 = vmatpush.bf16.msra.mxu0 %v1158
    %1276 = vmatpush.bf16.msra.mxu0 %v1156
    %1277 = vmatpush.bf16.msra.mxu0 %v1154
    %1278 = vmatpush.bf16.msra.mxu0 %v1152
    %1279 = vmatmul.bf16.gmra.mxu0 %v358
    %v1280 = vpop.f32.mrf.mxu0
    %v1281 = vadd.f32 %v1268, %v1280
    %v1282 = vpop.f32.mrf.mxu0
    %1283 = vdwg.mxu0
    %1284 = vmatpush.bf16.msra.mxu0 %v1119
    %1285 = vmatpush.bf16.msra.mxu0 %v1117
    %1286 = vmatpush.bf16.msra.mxu0 %v1115
    %1287 = vmatpush.bf16.msra.mxu0 %v1113
    %1288 = vmatpush.bf16.msra.mxu0 %v1111
    %1289 = vmatpush.bf16.msra.mxu0 %v1109
    %1290 = vmatpush.bf16.msra.mxu0 %v1107
    %1291 = vmatpush.bf16.msra.mxu0 %v1105
    %1292 = vmatmul.bf16.gmra.mxu0 %v355
    %v1293 = vpop.f32.mrf.mxu0
    %v1294 = vadd.f32 0.0, %v1293
    %v1295 = vpop.f32.mrf.mxu0
    %1296 = vdwg.mxu0
    %1297 = vmatpush.bf16.msra.mxu0 %v1135
    %1298 = vmatpush.bf16.msra.mxu0 %v1133
    %1299 = vmatpush.bf16.msra.mxu0 %v1131
    %1300 = vmatpush.bf16.msra.mxu0 %v1129
    %1301 = vmatpush.bf16.msra.mxu0 %v1127
    %1302 = vmatpush.bf16.msra.mxu0 %v1125
    %1303 = vmatpush.bf16.msra.mxu0 %v1123
    %1304 = vmatpush.bf16.msra.mxu0 %v1121
    %1305 = vmatmul.bf16.gmra.mxu0 %v356
    %v1306 = vpop.f32.mrf.mxu0
    %v1307 = vadd.f32 %v1294, %v1306
    %v1308 = vpop.f32.mrf.mxu0
    %1309 = vdwg.mxu0
    %1310 = vmatpush.bf16.msra.mxu0 %v1151
    %1311 = vmatpush.bf16.msra.mxu0 %v1149
    %1312 = vmatpush.bf16.msra.mxu0 %v1147
    %1313 = vmatpush.bf16.msra.mxu0 %v1145
    %1314 = vmatpush.bf16.msra.mxu0 %v1143
    %1315 = vmatpush.bf16.msra.mxu0 %v1141
    %1316 = vmatpush.bf16.msra.mxu0 %v1139
    %1317 = vmatpush.bf16.msra.mxu0 %v1137
    %1318 = vmatmul.bf16.gmra.mxu0 %v357
    %v1319 = vpop.f32.mrf.mxu0
    %v1320 = vadd.f32 %v1307, %v1319
    %v1321 = vpop.f32.mrf.mxu0
    %1322 = vdwg.mxu0
    %1323 = vmatpush.bf16.msra.mxu0 %v1167
    %1324 = vmatpush.bf16.msra.mxu0 %v1165
    %1325 = vmatpush.bf16.msra.mxu0 %v1163
    %1326 = vmatpush.bf16.msra.mxu0 %v1161
    %1327 = vmatpush.bf16.msra.mxu0 %v1159
    %1328 = vmatpush.bf16.msra.mxu0 %v1157
    %1329 = vmatpush.bf16.msra.mxu0 %v1155
    %1330 = vmatpush.bf16.msra.mxu0 %v1153
    %1331 = vmatmul.bf16.gmra.mxu0 %v358
    %v1332 = vpop.f32.mrf.mxu0
    %v1333 = vadd.f32 %v1320, %v1332
    %v1334 = vpop.f32.mrf.mxu0
    %1335 = vdwg.mxu0
    %v1336 = vmax.f32 %v792, %v1281
    %v1337 = vmax.f32 %v844, %v1333
    %v1338 = vpack.c.bf16 %v1336, %v1336
    %v1339 = vpack.c.bf16 %v1337, %v1337
    %v1340 = vld [vmem:[%s4] sm:$0xf]
    %v1341 = vld [vmem:[%s4 + $0x4] sm:$0xf]
    %v1342 = vld [vmem:[%s4 + $0x8] sm:$0xf]
    %v1343 = vld [vmem:[%s4 + $0xc] sm:$0xf]
    %v1344 = vld [vmem:[%s4 + $0x10] sm:$0xf]
    %v1345 = vld [vmem:[%s4 + $0x14] sm:$0xf]
    %v1346 = vld [vmem:[%s4 + $0x18] sm:$0xf]
    %v1347 = vld [vmem:[%s4 + $0x1c] sm:$0xf]
    %v1348 = vld [vmem:[%s4 + $0x20] sm:$0xf]
    %v1349 = vld [vmem:[%s4 + $0x24] sm:$0xf]
    %v1350 = vld [vmem:[%s4 + $0x28] sm:$0xf]
    %v1351 = vld [vmem:[%s4 + $0x2c] sm:$0xf]
    %v1352 = vld [vmem:[%s4 + $0x30] sm:$0xf]
    %v1353 = vld [vmem:[%s4 + $0x34] sm:$0xf]
    %v1354 = vld [vmem:[%s4 + $0x38] sm:$0xf]
    %v1355 = vld [vmem:[%s4 + $0x3c] sm:$0xf]
    %v1356 = vld [vmem:[%s4 + $0x40] sm:$0xf]
    %v1357 = vld [vmem:[%s4 + $0x44] sm:$0xf]
    %v1358 = vld [vmem:[%s4 + $0x48] sm:$0xf]
    %v1359 = vld [vmem:[%s4 + $0x4c] sm:$0xf]
    %v1360 = vld [vmem:[%s4 + $0x50] sm:$0xf]
    %v1361 = vld [vmem:[%s4 + $0x54] sm:$0xf]
    %v1362 = vld [vmem:[%s4 + $0x58] sm:$0xf]
    %v1363 = vld [vmem:[%s4 + $0x5c] sm:$0xf]
    %v1364 = vld [vmem:[%s4 + $0x60] sm:$0xf]
    %v1365 = vld [vmem:[%s4 + $0x64] sm:$0xf]
    %v1366 = vld [vmem:[%s4 + $0x68] sm:$0xf]
    %v1367 = vld [vmem:[%s4 + $0x6c] sm:$0xf]
    %v1368 = vld [vmem:[%s4 + $0x70] sm:$0xf]
    %v1369 = vld [vmem:[%s4 + $0x74] sm:$0xf]
    %v1370 = vld [vmem:[%s4 + $0x78] sm:$0xf]
    %v1371 = vld [vmem:[%s4 + $0x7c] sm:$0xf]
    %v1372 = vld [vmem:[%s5] sm:$0x1]
    %v1374 = vperm.slane %v1372, 0
    %v1408 = vunpack.c.l.b16 %v1340
    %v1409 = vunpack.c.l.b16 %v1341
    %v1410 = vunpack.c.l.b16 %v1342
    %v1411 = vunpack.c.l.b16 %v1343
    %v1412 = vunpack.c.l.b16 %v1344
    %v1413 = vunpack.c.l.b16 %v1345
    %v1414 = vunpack.c.l.b16 %v1346
    %v1415 = vunpack.c.l.b16 %v1347
    %v1416 = vunpack.c.l.b16 %v1348
    %v1417 = vunpack.c.l.b16 %v1349
    %v1418 = vunpack.c.l.b16 %v1350
    %v1419 = vunpack.c.l.b16 %v1351
    %v1420 = vunpack.c.l.b16 %v1352
    %v1421 = vunpack.c.l.b16 %v1353
    %v1422 = vunpack.c.l.b16 %v1354
    %v1423 = vunpack.c.l.b16 %v1355
    %v1424 = vunpack.c.l.b16 %v1356
    %v1425 = vunpack.c.l.b16 %v1357
    %v1426 = vunpack.c.l.b16 %v1358
    %v1427 = vunpack.c.l.b16 %v1359
    %v1428 = vunpack.c.l.b16 %v1360
    %v1429 = vunpack.c.l.b16 %v1361
    %v1430 = vunpack.c.l.b16 %v1362
    %v1431 = vunpack.c.l.b16 %v1363
    %v1432 = vunpack.c.l.b16 %v1364
    %v1433 = vunpack.c.l.b16 %v1365
    %v1434 = vunpack.c.l.b16 %v1366
    %v1435 = vunpack.c.l.b16 %v1367
    %v1436 = vunpack.c.l.b16 %v1368
    %v1437 = vunpack.c.l.b16 %v1369
    %v1438 = vunpack.c.l.b16 %v1370
    %v1439 = vunpack.c.l.b16 %v1371
    %v1440 = vpack.c.b16 %v1409, %v1408
    %v1441 = vpack.c.b16 %v1411, %v1410
    %v1442 = vpack.c.b16 %v1413, %v1412
    %v1443 = vpack.c.b16 %v1415, %v1414
    %v1444 = vpack.c.b16 %v1417, %v1416
    %v1445 = vpack.c.b16 %v1419, %v1418
    %v1446 = vpack.c.b16 %v1421, %v1420
    %v1447 = vpack.c.b16 %v1423, %v1422
    %v1448 = vpack.c.b16 %v1425, %v1424
    %v1449 = vpack.c.b16 %v1427, %v1426
    %v1450 = vpack.c.b16 %v1429, %v1428
    %v1451 = vpack.c.b16 %v1431, %v1430
    %v1452 = vpack.c.b16 %v1433, %v1432
    %v1453 = vpack.c.b16 %v1435, %v1434
    %v1454 = vpack.c.b16 %v1437, %v1436
    %v1455 = vpack.c.b16 %v1439, %v1438
    %1472 = vmatpush.bf16.msra.mxu0 %v1447
    %1473 = vmatpush.bf16.msra.mxu0 %v1446
    %1474 = vmatpush.bf16.msra.mxu0 %v1445
    %1475 = vmatpush.bf16.msra.mxu0 %v1444
    %1476 = vmatpush.bf16.msra.mxu0 %v1443
    %1477 = vmatpush.bf16.msra.mxu0 %v1442
    %1478 = vmatpush.bf16.msra.mxu0 %v1441
    %1479 = vmatpush.bf16.msra.mxu0 %v1440
    %1480 = vmatmul.bf16.gmra.mxu0 %v1338
    %v1481 = vpop.f32.mrf.mxu0
    %v1482 = vadd.f32 %v1374, %v1481
    %v1483 = vpop.f32.mrf.mxu0
    %1484 = vdwg.mxu0
    %1485 = vmatpush.bf16.msra.mxu0 %v1455
    %1486 = vmatpush.bf16.msra.mxu0 %v1454
    %1487 = vmatpush.bf16.msra.mxu0 %v1453
    %1488 = vmatpush.bf16.msra.mxu0 %v1452
    %1489 = vmatpush.bf16.msra.mxu0 %v1451
    %1490 = vmatpush.bf16.msra.mxu0 %v1450
    %1491 = vmatpush.bf16.msra.mxu0 %v1449
    %1492 = vmatpush.bf16.msra.mxu0 %v1448
    %1493 = vmatmul.bf16.gmra.mxu0 %v1339
    %v1494 = vpop.f32.mrf.mxu0
    %v1495 = vadd.f32 %v1482, %v1494
    %v1496 = vpop.f32.mrf.mxu0
    %1497 = vdwg.mxu0
    %v1498 = vmax.f32 %v1495, 0.0
    %v1499 = vpack.c.bf16 %v1498, %v1498
    %v1500 = vld [vmem:[%s6] sm:$0xf]
    %v1501 = vld [vmem:[%s6 + $0x4] sm:$0xf]
    %v1502 = vld [vmem:[%s6 + $0x8] sm:$0xf]
    %v1503 = vld [vmem:[%s6 + $0xc] sm:$0xf]
    %v1504 = vld [vmem:[%s6 + $0x10] sm:$0xf]
    %v1505 = vld [vmem:[%s6 + $0x14] sm:$0xf]
    %v1506 = vld [vmem:[%s6 + $0x18] sm:$0xf]
    %v1507 = vld [vmem:[%s6 + $0x1c] sm:$0xf]
    %v1508 = vld [vmem:[%s6 + $0x20] sm:$0xf]
    %v1509 = vld [vmem:[%s6 + $0x24] sm:$0xf]
    %v1510 = vld [vmem:[%s6 + $0x28] sm:$0xf]
    %v1511 = vld [vmem:[%s6 + $0x2c] sm:$0xf]
    %v1512 = vld [vmem:[%s6 + $0x30] sm:$0xf]
    %v1513 = vld [vmem:[%s6 + $0x34] sm:$0xf]
    %v1514 = vld [vmem:[%s6 + $0x38] sm:$0xf]
    %v1515 = vld [vmem:[%s6 + $0x3c] sm:$0xf]
    %v1532 = vunpack.c.l.b16 %v1500
    %v1533 = vunpack.c.l.b16 %v1501
    %v1534 = vunpack.c.l.b16 %v1502
    %v1535 = vunpack.c.l.b16 %v1503
    %v1536 = vunpack.c.l.b16 %v1504
    %v1537 = vunpack.c.l.b16 %v1505
    %v1538 = vunpack.c.l.b16 %v1506
    %v1539 = vunpack.c.l.b16 %v1507
    %v1540 = vunpack.c.l.b16 %v1508
    %v1541 = vunpack.c.l.b16 %v1509
    %v1542 = vunpack.c.l.b16 %v1510
    %v1543 = vunpack.c.l.b16 %v1511
    %v1544 = vunpack.c.l.b16 %v1512
    %v1545 = vunpack.c.l.b16 %v1513
    %v1546 = vunpack.c.l.b16 %v1514
    %v1547 = vunpack.c.l.b16 %v1515
    %v1548 = vpack.c.b16 %v1533, %v1532
    %v1549 = vpack.c.b16 %v1535, %v1534
    %v1550 = vpack.c.b16 %v1537, %v1536
    %v1551 = vpack.c.b16 %v1539, %v1538
    %v1552 = vpack.c.b16 %v1541, %v1540
    %v1553 = vpack.c.b16 %v1543, %v1542
    %v1554 = vpack.c.b16 %v1545, %v1544
    %v1555 = vpack.c.b16 %v1547, %v1546
    %1564 = vmatpush.bf16.msra.mxu0 %v1555
    %1565 = vmatpush.bf16.msra.mxu0 %v1554
    %1566 = vmatpush.bf16.msra.mxu0 %v1553
    %1567 = vmatpush.bf16.msra.mxu0 %v1552
    %1568 = vmatpush.bf16.msra.mxu0 %v1551
    %1569 = vmatpush.bf16.msra.mxu0 %v1550
    %1570 = vmatpush.bf16.msra.mxu0 %v1549
    %1571 = vmatpush.bf16.msra.mxu0 %v1548
    %1572 = vmatmul.bf16.gmra.mxu0 %v1499
    %v1573 = vpop.f32.mrf.mxu0
    %v1574 = vadd.f32 0.0, %v1573
    %v1575 = vpop.f32.mrf.mxu0
    %1576 = vdwg.mxu0
    %s1577 = scalar_lea.vmem %s6, 64
    %v1578 = vld [vmem:[%s1577] sm:$0xf]
    %v1579 = vld [vmem:[%s1577 + $0x4] sm:$0xf]
    %v1580 = vld [vmem:[%s1577 + $0x8] sm:$0xf]
    %v1581 = vld [vmem:[%s1577 + $0xc] sm:$0xf]
    %v1582 = vld [vmem:[%s1577 + $0x10] sm:$0xf]
    %v1583 = vld [vmem:[%s1577 + $0x14] sm:$0xf]
    %v1584 = vld [vmem:[%s1577 + $0x18] sm:$0xf]
    %v1585 = vld [vmem:[%s1577 + $0x1c] sm:$0xf]
    %v1586 = vld [vmem:[%s1577 + $0x20] sm:$0xf]
    %v1587 = vld [vmem:[%s1577 + $0x24] sm:$0xf]
    %v1588 = vld [vmem:[%s1577 + $0x28] sm:$0xf]
    %v1589 = vld [vmem:[%s1577 + $0x2c] sm:$0xf]
    %v1590 = vld [vmem:[%s1577 + $0x30] sm:$0xf]
    %v1591 = vld [vmem:[%s1577 + $0x34] sm:$0xf]
    %v1592 = vld [vmem:[%s1577 + $0x38] sm:$0xf]
    %v1593 = vld [vmem:[%s1577 + $0x3c] sm:$0xf]
    %v1610 = vunpack.c.l.b16 %v1578
    %v1611 = vunpack.c.l.b16 %v1579
    %v1612 = vunpack.c.l.b16 %v1580
    %v1613 = vunpack.c.l.b16 %v1581
    %v1614 = vunpack.c.l.b16 %v1582
    %v1615 = vunpack.c.l.b16 %v1583
    %v1616 = vunpack.c.l.b16 %v1584
    %v1617 = vunpack.c.l.b16 %v1585
    %v1618 = vunpack.c.l.b16 %v1586
    %v1619 = vunpack.c.l.b16 %v1587
    %v1620 = vunpack.c.l.b16 %v1588
    %v1621 = vunpack.c.l.b16 %v1589
    %v1622 = vunpack.c.l.b16 %v1590
    %v1623 = vunpack.c.l.b16 %v1591
    %v1624 = vunpack.c.l.b16 %v1592
    %v1625 = vunpack.c.l.b16 %v1593
    %v1626 = vpack.c.b16 %v1611, %v1610
    %v1627 = vpack.c.b16 %v1613, %v1612
    %v1628 = vpack.c.b16 %v1615, %v1614
    %v1629 = vpack.c.b16 %v1617, %v1616
    %v1630 = vpack.c.b16 %v1619, %v1618
    %v1631 = vpack.c.b16 %v1621, %v1620
    %v1632 = vpack.c.b16 %v1623, %v1622
    %v1633 = vpack.c.b16 %v1625, %v1624
    %1642 = vmatpush.bf16.msra.mxu0 %v1633
    %1643 = vmatpush.bf16.msra.mxu0 %v1632
    %1644 = vmatpush.bf16.msra.mxu0 %v1631
    %1645 = vmatpush.bf16.msra.mxu0 %v1630
    %1646 = vmatpush.bf16.msra.mxu0 %v1629
    %1647 = vmatpush.bf16.msra.mxu0 %v1628
    %1648 = vmatpush.bf16.msra.mxu0 %v1627
    %1649 = vmatpush.bf16.msra.mxu0 %v1626
    %1650 = vmatmul.bf16.gmra.mxu0 %v1499
    %v1651 = vpop.f32.mrf.mxu0
    %v1652 = vadd.f32 0.0, %v1651
    %v1653 = vpop.f32.mrf.mxu0
    %1654 = vdwg.mxu0
    %v1655 = vmax.f32 %v1574, %v1652
    %v1656 = vpack.c.bf16 %v1655, %v1655
    %v1657 = vld [vmem:[%s7] sm:$0xf]
    %v1658 = vld [vmem:[%s7 + $0x4] sm:$0xf]
    %v1659 = vld [vmem:[%s7 + $0x8] sm:$0xf]
    %v1660 = vld [vmem:[%s7 + $0xc] sm:$0xf]
    %v1661 = vld [vmem:[%s7 + $0x10] sm:$0xf]
    %v1662 = vld [vmem:[%s7 + $0x14] sm:$0xf]
    %v1663 = vld [vmem:[%s7 + $0x18] sm:$0xf]
    %v1664 = vld [vmem:[%s7 + $0x1c] sm:$0xf]
    %v1665 = vld [vmem:[%s8] sm:$0x1]
    %v1667 = vperm.slane %v1665, 0
    %v1677 = vunpack.c.l.b16 %v1657
    %v1678 = vunpack.c.l.b16 %v1658
    %v1679 = vunpack.c.l.b16 %v1659
    %v1680 = vunpack.c.l.b16 %v1660
    %v1681 = vunpack.c.l.b16 %v1661
    %v1682 = vunpack.c.l.b16 %v1662
    %v1683 = vunpack.c.l.b16 %v1663
    %v1684 = vunpack.c.l.b16 %v1664
    %v1685 = vpack.c.b16 %v1678, %v1677
    %v1686 = vpack.c.b16 %v1680, %v1679
    %v1687 = vpack.c.b16 %v1682, %v1681
    %v1688 = vpack.c.b16 %v1684, %v1683
    %vm1693 = vcmask 523264
    %v1695 = vsel %vm1693, %v1656, 0
    %1697 = vmatpush.bf16.msra.mxu0 0
    %1698 = vmatpush.bf16.msra.mxu0 0
    %1699 = vmatpush.bf16.msra.mxu0 0
    %1700 = vmatpush.bf16.msra.mxu0 0
    %1701 = vmatpush.bf16.msra.mxu0 %v1688
    %1702 = vmatpush.bf16.msra.mxu0 %v1687
    %1703 = vmatpush.bf16.msra.mxu0 %v1686
    %1704 = vmatpush.bf16.msra.mxu0 %v1685
    %1705 = vmatmul.bf16.gmra.mxu0 %v1695
    %v1706 = vpop.f32.mrf.mxu0
    %v1707 = vadd.f32 %v1667, %v1706
    %v1708 = vpop.f32.mrf.mxu0
    %1709 = vdwg.mxu0
    %v1710 = vmax.f32 %v1707, 0.0
    %v1711 = vpack.c.bf16 %v1710, %v1710
    %v1712 = vld [vmem:[%s9] sm:$0xf]
    %v1713 = vld [vmem:[%s9 + $0x4] sm:$0xf]
    %v1714 = vld [vmem:[%s9 + $0x8] sm:$0xf]
    %v1715 = vld [vmem:[%s9 + $0xc] sm:$0xf]
    %v1716 = vld [vmem:[%s10] sm:$0x1]
    %v1718 = vperm.slane %v1716, 0
    %v1724 = vunpack.c.l.b16 %v1712
    %v1725 = vunpack.c.l.b16 %v1713
    %v1726 = vunpack.c.l.b16 %v1714
    %v1727 = vunpack.c.l.b16 %v1715
    %v1728 = vpack.c.b16 %v1725, %v1724
    %v1729 = vpack.c.b16 %v1727, %v1726
    %vm1732 = vcmask 261120
    %v1734 = vsel %vm1732, %v1711, 0
    %1736 = vmatpush.bf16.msra.mxu0 0
    %1737 = vmatpush.bf16.msra.mxu0 0
    %1738 = vmatpush.bf16.msra.mxu0 0
    %1739 = vmatpush.bf16.msra.mxu0 0
    %1740 = vmatpush.bf16.msra.mxu0 0
    %1741 = vmatpush.bf16.msra.mxu0 0
    %1742 = vmatpush.bf16.msra.mxu0 %v1729
    %1743 = vmatpush.bf16.msra.mxu0 %v1728
    %1744 = vmatmul.bf16.gmra.mxu0 %v1734
    %v1745 = vpop.f32.mrf.mxu0
    %v1746 = vadd.f32 %v1718, %v1745
    %v1747 = vpop.f32.mrf.mxu0
    %1748 = vdwg.mxu0
    %v1749 = vtanh.pop %v1746
    %v1750 = vpack.c.bf16 %v1749, %v1749
    %v1751 = vld [vmem:[%s11] sm:$0xf]
    %v1752 = vld [vmem:[%s11 + $0x4] sm:$0xf]
    %v1753 = vld [vmem:[%s12] sm:$0x1]
    %v1755 = vperm.slane %v1753, 0
    %v1759 = vunpack.c.l.b16 %v1751
    %v1760 = vunpack.c.l.b16 %v1752
    %v1761 = vpack.c.b16 %v1760, %v1759
    %vm1763 = vcmask 130048
    %v1765 = vsel %vm1763, %v1750, 0
    %1767 = vmatpush.bf16.msra.mxu0 0
    %1768 = vmatpush.bf16.msra.mxu0 0
    %1769 = vmatpush.bf16.msra.mxu0 0
    %1770 = vmatpush.bf16.msra.mxu0 0
    %1771 = vmatpush.bf16.msra.mxu0 0
    %1772 = vmatpush.bf16.msra.mxu0 0
    %1773 = vmatpush.bf16.msra.mxu0 0
    %1774 = vmatpush.bf16.msra.mxu0 %v1761
    %1775 = vmatmul.bf16.gmra.mxu0 %v1765
    %v1776 = vpop.f32.mrf.mxu0
    %v1777 = vadd.f32 %v1755, %v1776
    %v1778 = vpop.f32.mrf.mxu0
    %1779 = vdwg.mxu0
    %v1780 = vmax.f32 %v1777, 0.0
    %v1781 = vpack.c.bf16 %v1780, %v1780
    %v1782 = vld [vmem:[%s13] sm:$0xf]
    %v1783 = vld [vmem:[%s13 + $0x4] sm:$0xf]
    %v1784 = vld [vmem:[%s13 + $0x8] sm:$0xf]
    %v1785 = vld [vmem:[%s13 + $0xc] sm:$0xf]
    %v1786 = vld [vmem:[%s14] sm:$0x1]
    %v1788 = vperm.slane %v1786, 0
    %v1794 = vunpack.c.l.b16 %v1782
    %v1795 = vunpack.c.l.b16 %v1783
    %v1796 = vunpack.c.l.b16 %v1784
    %v1797 = vunpack.c.l.b16 %v1785
    %v1798 = vpack.c.b16 %v1795, %v1794
    %v1799 = vpack.c.b16 %v1797, %v1796
    %v1803 = vsel %vm1732, %v1781, 0
    %1805 = vmatpush.bf16.msra.mxu0 0
    %1806 = vmatpush.bf16.msra.mxu0 0
    %1807 = vmatpush.bf16.msra.mxu0 0
    %1808 = vmatpush.bf16.msra.mxu0 0
    %1809 = vmatpush.bf16.msra.mxu0 0
    %1810 = vmatpush.bf16.msra.mxu0 0
    %1811 = vmatpush.bf16.msra.mxu0 %v1799
    %1812 = vmatpush.bf16.msra.mxu0 %v1798
    %1813 = vmatmul.bf16.gmra.mxu0 %v1803
    %v1814 = vpop.f32.mrf.mxu0
    %v1815 = vadd.f32 %v1788, %v1814
    %v1816 = vpop.f32.mrf.mxu0
    %1817 = vdwg.mxu0
    %v1818 = vmax.f32 %v1815, 0.0
    %v1819 = vpack.c.bf16 %v1818, %v1818
    %v1820 = vld [vmem:[%s15] sm:$0xf]
    %v1821 = vld [vmem:[%s16] sm:$0x1]
    %v1823 = vperm.slane %v1821, 0
    %vm1825 = vcmask 64512
    %v1827 = vsel %vm1825, %v1819, 0
    %vm1829 = vcmask 1043456
    %v1831 = vsel %vm1829, %v1820, 0
    %1833 = vmatpush.bf16.msra.mxu0 0
    %1834 = vmatpush.bf16.msra.mxu0 0
    %1835 = vmatpush.bf16.msra.mxu0 0
    %1836 = vmatpush.bf16.msra.mxu0 0
    %1837 = vmatpush.bf16.msra.mxu0 0
    %1838 = vmatpush.bf16.msra.mxu0 0
    %1839 = vmatpush.bf16.msra.mxu0 0
    %1840 = vmatpush.bf16.msra.mxu0 %v1831
    %1841 = vmatmul.bf16.gmra.mxu0 %v1827
    %v1842 = vpop.f32.mrf.mxu0
    %v1843 = vadd.f32 %v1823, %v1842
    %v1844 = vpop.f32.mrf.mxu0
    %1845 = vdwg.mxu0
    %v1846 = vmax.f32 %v1843, 0.0
    %v1847 = vpack.c.bf16 %v1846, %v1846
    %v1848 = vld [vmem:[%s17] sm:$0xf]
    %v1849 = vld [vmem:[%s17 + $0x4] sm:$0xf]
    %v1850 = vld [vmem:[%s18] sm:$0x1]
    %v1852 = vperm.slane %v1850, 0
    %v1856 = vunpack.c.l.b16 %v1848
    %v1857 = vunpack.c.l.b16 %v1849
    %v1858 = vpack.c.b16 %v1857, %v1856
    %v1861 = vsel %vm1763, %v1847, 0
    %1863 = vmatpush.bf16.msra.mxu0 0
    %1864 = vmatpush.bf16.msra.mxu0 0
    %1865 = vmatpush.bf16.msra.mxu0 0
    %1866 = vmatpush.bf16.msra.mxu0 0
    %1867 = vmatpush.bf16.msra.mxu0 0
    %1868 = vmatpush.bf16.msra.mxu0 0
    %1869 = vmatpush.bf16.msra.mxu0 0
    %1870 = vmatpush.bf16.msra.mxu0 %v1858
    %1871 = vmatmul.bf16.gmra.mxu0 %v1861
    %v1872 = vpop.f32.mrf.mxu0
    %v1873 = vadd.f32 %v1852, %v1872
    %v1874 = vpop.f32.mrf.mxu0
    %1875 = vdwg.mxu0
    %vm1876 = vcmask 31744
    %1877 = vst.msk [vmem:[%s19] sm:$0xff] %vm1876, %v1873
    // Predicated region
    $region86: #{mass_spec_autoencoder_forward.1} parent=1 // pred_check
      _
    $region87: #{mass_spec_autoencoder_forward.1} parent=1 // pred_check_branch
      %1879 = sbr.rel (0) target = $region89
    $region88: #{mass_spec_autoencoder_forward.1} parent=1 // pred_region
      _
    $region89: #{mass_spec_autoencoder_forward.1} parent=1 // pred_fallthru
      _
    // Predicated region
    $region90: #{mass_spec_autoencoder_forward.1} parent=1 // pred_check
      _
    $region91: #{mass_spec_autoencoder_forward.1} parent=1 // pred_check_branch
      %1881 = sbr.rel (0) target = $region93
    $region92: #{mass_spec_autoencoder_forward.1} parent=1 // pred_region
      _
    $region93: #{mass_spec_autoencoder_forward.1} parent=1 // pred_fallthru
      _
    %1882 = vsyncpa [#allocation3], 1
    %1883 = vsyncpa [#allocation5], 1

</llo_original>
